<compile_context>
chip_gen: v7x
topology: tpu7x:2x2x1
jax: 0.10.0
libtpu: 0.0.40
codegen_flags: <defaults>
</compile_context>

<pallas_src>
import jax
import jax.numpy as jnp
from jax.experimental import pallas as pl
from jax.experimental.pallas import tpu as pltpu


# ---------------------------------------------------------------------------
# Kernel 1: fused (x -> gates matmul) + sequential LSTM recurrence.
# ---------------------------------------------------------------------------
def _lstm_fused_kernel(x_ref, wih_ref, whh_ref, b_ref, h_out_ref,
                       gx_ref, hc_ref):
    """x_ref     : (Tc*B, E)  bf16   time-major chunk of embedded inputs
       wih_ref   : (E, 4H)    bf16   input->gates weight (transposed)
       whh_ref   : (H, 4H)    bf16   hidden->gates weight (transposed)
       b_ref     : (1, 4H)    f32    combined bias (b_ih + b_hh)
       h_out_ref : (Tc*B, H)  bf16   hidden state for every timestep in chunk
       gx_ref    : (Tc*B, 4H) f32    VMEM scratch: precomputed x->gates
       hc_ref    : (2, B, H)  f32    VMEM scratch: (h, c) carry across chunks
    """
    B = hc_ref.shape[1]
    H = hc_ref.shape[2]
    Tc = x_ref.shape[0] // B

    @pl.when(pl.program_id(0) == 0)
    def _():
        hc_ref[...] = jnp.zeros_like(hc_ref)

    # (1) Hoisted input->gates matmul for the whole chunk: one batched MXU
    #     matmul that fills the lanes, instead of Tc tiny 8-row matmuls.
    gx_ref[...] = (
        jnp.dot(x_ref[...], wih_ref[...], preferred_element_type=jnp.float32)
        + b_ref[...])

    # (2) Serial recurrence: only h_prev @ W_hh remains inside the loop.
    whh = whh_ref[...]                      # load once per chunk, reuse per step

    def _sigmoid(z):                        # 1 EUP push instead of exp + recip
        return 0.5 * jnp.tanh(0.5 * z) + 0.5

    def step(t, carry):
        h, c = carry                                        # (B, H) f32
        row = pl.multiple_of(t * B, B)                      # sublane-aligned
        gates = gx_ref[pl.ds(row, B), :] + jnp.dot(
            h.astype(whh.dtype), whh, preferred_element_type=jnp.float32)
        # PyTorch LSTM gate order: input, forget, cell (g), output.
        i_g = _sigmoid(gates[:, 0 * H:1 * H])
        f_g = _sigmoid(gates[:, 1 * H:2 * H])
        g_g = jnp.tanh(gates[:, 2 * H:3 * H])
        o_g = _sigmoid(gates[:, 3 * H:4 * H])
        c_new = f_g * c + i_g * g_g
        h_new = o_g * jnp.tanh(c_new)
        h_out_ref[pl.ds(row, B), :] = h_new.astype(h_out_ref.dtype)
        return h_new, c_new

    h_f, c_f = jax.lax.fori_loop(0, Tc, step, (hc_ref[0], hc_ref[1]),
                                 unroll=True)
    hc_ref[0] = h_f
    hc_ref[1] = c_f


def _pick_time_chunk(t):
    # Prefer >= 2 grid steps so chunk DMAs / writeback pipeline behind compute.
    for tc in (8, 16, 32, 64):
        if t % tc == 0 and t // tc >= 2:
            return tc
    return t


def lstm_fused(x_tb, w_ih_t, w_hh_t, b_comb, *, batch, time_chunk=None):
    """x_tb: [T*B, E] bf16 (time-major) -> h_seq [T*B, H] bf16 (time-major)."""
    TB, E = x_tb.shape
    T = TB // batch
    H = w_hh_t.shape[0]
    G = w_hh_t.shape[1]
    Tc = time_chunk or _pick_time_chunk(T)
    assert T % Tc == 0, (T, Tc)
    return pl.pallas_call(
        _lstm_fused_kernel,
        out_shape=jax.ShapeDtypeStruct((TB, H), jnp.bfloat16),
        grid=(T // Tc,),
        in_specs=[
            pl.BlockSpec((Tc * batch, E), lambda i: (i, 0)),   # x chunk
            pl.BlockSpec((E, G), lambda i: (0, 0)),            # W_ih (resident)
            pl.BlockSpec((H, G), lambda i: (0, 0)),            # W_hh (resident)
            pl.BlockSpec((1, G), lambda i: (0, 0)),            # bias
        ],
        out_specs=pl.BlockSpec((Tc * batch, H), lambda i: (i, 0)),
        scratch_shapes=[
            pltpu.VMEM((Tc * batch, G), jnp.float32),   # chunk x->gates
            pltpu.VMEM((2, batch, H), jnp.float32),     # (h, c) carry
        ],
        compiler_params=pltpu.CompilerParams(
            dimension_semantics=("arbitrary",)),        # time recurrence serial
    )(x_tb, w_ih_t, w_hh_t, b_comb)


# ---------------------------------------------------------------------------
# Kernel 2: N-tiled FC projection writing logits directly in [B, T, V].
# ---------------------------------------------------------------------------
def _fc_kernel(h_ref, w_ref, b_ref, o_ref):
    """h_ref: (1, T, H) bf16, w_ref: (H, tn) bf16, b_ref: (1, tn) f32,
       o_ref: (1, T, tn) f32."""
    o_ref[0] = (
        jnp.dot(h_ref[0], w_ref[...], preferred_element_type=jnp.float32)
        + b_ref[...]).astype(o_ref.dtype)


def _pick_fc_tile(v):
    for tn in (1024, 512, 256, 128):
        if v % tn == 0:
            return tn
    return v


def fc_projection(h_bt, w_fc_t, b_fc, *, tile_n=None):
    """h_bt: [B, T, H] bf16 -> logits [B, T, V] f32 (no output transpose)."""
    B, T, H = h_bt.shape
    V = w_fc_t.shape[1]
    tn = tile_n or _pick_fc_tile(V)
    assert V % tn == 0, (V, tn)
    return pl.pallas_call(
        _fc_kernel,
        out_shape=jax.ShapeDtypeStruct((B, T, V), jnp.float32),
        grid=(V // tn, B),       # vocab tile outer -> each weight tile DMA'd once
        in_specs=[
            pl.BlockSpec((1, T, H), lambda j, b: (b, 0, 0)),   # one batch row
            pl.BlockSpec((H, tn), lambda j, b: (0, j)),        # weight tile
            pl.BlockSpec((1, tn), lambda j, b: (0, j)),        # bias tile
        ],
        out_specs=pl.BlockSpec((1, T, tn), lambda j, b: (b, 0, j)),
        compiler_params=pltpu.CompilerParams(
            dimension_semantics=("parallel", "parallel")),
    )(h_bt, w_fc_t, b_fc)


# ---------------------------------------------------------------------------
# Full forward (Pallas-backed equivalent of DecoderRNN.forward)
# ---------------------------------------------------------------------------
def decoder_rnn_forward(params, features, captions, *, time_chunk=None,
                        fc_tile_n=None):
    """features: [B, E] f32, captions: [B, L] int32 -> logits [B, L, V] f32."""
    caps = captions[:, :-1]                                      # [B, L-1]
    embed = params["embedding"][caps]                            # [B, L-1, E]
    x = jnp.concatenate([features[:, None, :], embed], axis=1)   # [B, T, E]
    B, T, E = x.shape
    H = params["w_hh_t"].shape[0]

    # Time-major flattened activations feed the fused gates+recurrence kernel.
    x_tb = jnp.transpose(x, (1, 0, 2)).reshape(T * B, E).astype(jnp.bfloat16)
    h_flat = lstm_fused(x_tb, params["w_ih_t"], params["w_hh_t"],
                        params["b_comb"], batch=B,
                        time_chunk=time_chunk)                   # [T*B, H] bf16

    # Small batch-major shuffle of the hidden states (V/H times smaller than
    # the logits) so the FC kernel can emit [B, T, V] directly.
    h_bt = jnp.transpose(h_flat.reshape(T, B, H), (1, 0, 2))     # [B, T, H]

    return fc_projection(h_bt, params["w_fc_t"], params["b_fc"],
                         tile_n=fc_tile_n)                       # [B, T, V] f32


def init_params(key, embed_size, hidden_size, vocab_size):
    """Deterministic params matching the PyTorch module's shapes (bf16 weights)."""
    k = jax.random.split(key, 7)
    s = 1.0 / jnp.sqrt(hidden_size)
    w_ih = jax.random.uniform(k[0], (4 * hidden_size, embed_size), jnp.float32, -s, s)
    w_hh = jax.random.uniform(k[1], (4 * hidden_size, hidden_size), jnp.float32, -s, s)
    b_ih = jax.random.uniform(k[2], (4 * hidden_size,), jnp.float32, -s, s)
    b_hh = jax.random.uniform(k[3], (4 * hidden_size,), jnp.float32, -s, s)
    w_fc = jax.random.uniform(k[4], (vocab_size, hidden_size), jnp.float32, -s, s)
    b_fc = jax.random.uniform(k[5], (vocab_size,), jnp.float32, -s, s)
    emb = jax.random.normal(k[6], (vocab_size, embed_size), jnp.float32)
    return {
        "embedding": emb,                               # [V, E] f32
        "w_ih_t": w_ih.T.astype(jnp.bfloat16),          # [E, 4H]
        "w_hh_t": w_hh.T.astype(jnp.bfloat16),          # [H, 4H]
        "b_comb": (b_ih + b_hh)[None, :],               # [1, 4H] f32
        "w_fc_t": w_fc.T.astype(jnp.bfloat16),          # [H, V]
        "b_fc": b_fc[None, :],                          # [1, V] f32
    }


def _reference_forward(params, features, captions):
    """Pure-JAX reference (same bf16 operand quantization, f32 accumulation)."""
    caps = captions[:, :-1]
    embed = params["embedding"][caps]
    x = jnp.concatenate([features[:, None, :], embed], axis=1)   # [B, T, E]
    B, T, E = x.shape
    H = params["w_hh_t"].shape[0]

    gx = (jnp.einsum("bte,eg->btg", x.astype(jnp.bfloat16), params["w_ih_t"],
                     preferred_element_type=jnp.float32) + params["b_comb"])
    gx = jnp.transpose(gx, (1, 0, 2))                            # [T, B, 4H]

    def step(carry, gx_t):
        h, c = carry
        gates = gx_t + jnp.dot(h.astype(jnp.bfloat16), params["w_hh_t"],
                               preferred_element_type=jnp.float32)
        i = jax.nn.sigmoid(gates[:, 0 * H:1 * H])
        f = jax.nn.sigmoid(gates[:, 1 * H:2 * H])
        g = jnp.tanh(gates[:, 2 * H:3 * H])
        o = jax.nn.sigmoid(gates[:, 3 * H:4 * H])
        c = f * c + i * g
        h = o * jnp.tanh(c)
        return (h, c), h

    h0 = jnp.zeros((B, H), jnp.float32)
    _, hs = jax.lax.scan(step, (h0, h0), gx)                     # [T, B, H] f32
    hs = hs.astype(jnp.bfloat16)
    out = (jnp.einsum("tbh,hv->tbv", hs, params["w_fc_t"],
                      preferred_element_type=jnp.float32) + params["b_fc"])
    return jnp.transpose(out, (1, 0, 2))                         # [B, T, V]


if __name__ == "__main__":
    embed_size, hidden_size, vocab_size = 32, 128, 256
    batch, cap_len = 8, 16            # T = (cap_len - 1) + 1 = 16 timesteps

    key = jax.random.PRNGKey(0)
    pkey, fkey, ckey = jax.random.split(key, 3)
    params = init_params(pkey, embed_size, hidden_size, vocab_size)

    features = jax.random.normal(fkey, (batch, embed_size), jnp.float32)
    captions = jax.random.randint(ckey, (batch, cap_len), 0, vocab_size, jnp.int32)

    # time_chunk=8 -> 2-step recurrence grid; fc_tile_n=128 -> 2 vocab tiles,
    # so both multi-block code paths are exercised at small shapes.
    fwd = jax.jit(lambda f, c: decoder_rnn_forward(
        params, f, c, time_chunk=8, fc_tile_n=128))
    out = jax.block_until_ready(fwd(features, captions))

    assert out.shape == (batch, cap_len, vocab_size), out.shape

    ref = _reference_forward(params, features, captions)
    max_err = float(jnp.max(jnp.abs(out - ref)))
    assert jnp.allclose(out, ref, rtol=2e-2, atol=2e-2), max_err

    print("KERNEL_OK")
</pallas_src>

<mosaic_0001>
module attributes {stable_mosaic.version = 11 : i64} {
  func.func @_lstm_fused_kernel(%arg0: i32, %arg1: memref<64x32xbf16, #tpu.memory_space<vmem>>, %arg2: memref<32x512xbf16, #tpu.memory_space<vmem>>, %arg3: memref<128x512xbf16, #tpu.memory_space<vmem>>, %arg4: memref<1x512xf32, #tpu.memory_space<vmem>>, %arg5: memref<64x128xbf16, #tpu.memory_space<vmem>>, %arg6: memref<64x512xf32, #tpu.memory_space<vmem>>, %arg7: memref<2x8x128xf32, #tpu.memory_space<vmem>>) attributes {dimension_semantics = [#tpu.dimension_semantics<arbitrary>], iteration_bounds = array<i64: 2>, scalar_prefetch = 0 : i64, scratch_operands = 2 : i64, tpu.core_type = #tpu.core_type<tc>, window_params = [{transform_indices = @transform_0, window_bounds = array<i64: 64, 32>}, {pipeline_mode = #tpu.pipeline_mode<synchronous>, transform_indices = @transform_1, window_bounds = array<i64: 32, 512>}, {pipeline_mode = #tpu.pipeline_mode<synchronous>, transform_indices = @transform_2, window_bounds = array<i64: 128, 512>}, {pipeline_mode = #tpu.pipeline_mode<synchronous>, transform_indices = @transform_3, window_bounds = array<i64: 1, 512>}, {transform_indices = @transform_4, window_bounds = array<i64: 64, 128>}]} {
    %c0_i32 = arith.constant 0 : i32
    %0 = arith.cmpi eq, %arg0, %c0_i32 : i32
    %1 = arith.extui %0 : i1 to i32
    %c0_i32_0 = arith.constant 0 : i32
    %2 = arith.cmpi ne, %1, %c0_i32_0 : i32
    scf.if %2 {
      %cst_126 = arith.constant 0.000000e+00 : f32
      %349 = vector.broadcast %cst_126 : f32 to vector<2x8x128xf32>
      %c0_127 = arith.constant 0 : index
      %c0_128 = arith.constant 0 : index
      %c0_129 = arith.constant 0 : index
      %350 = vector.load %arg7[%c0_127, %c0_128, %c0_129] : memref<2x8x128xf32, #tpu.memory_space<vmem>>, vector<2x8x128xf32>
      tpu.vector_store %arg7[%c0_127, %c0_128, %c0_129], %349 {strides = array<i32>} : memref<2x8x128xf32, #tpu.memory_space<vmem>>, vector<2x8x128xf32>,
    } else {
    }
    %c0 = arith.constant 0 : index
    %c0_1 = arith.constant 0 : index
    %3 = vector.load %arg1[%c0, %c0_1] : memref<64x32xbf16, #tpu.memory_space<vmem>>, vector<64x32xbf16>
    %c0_2 = arith.constant 0 : index
    %c0_3 = arith.constant 0 : index
    %4 = vector.load %arg2[%c0_2, %c0_3] : memref<32x512xbf16, #tpu.memory_space<vmem>>, vector<32x512xbf16>
    %cst = arith.constant dense<0.000000e+00> : vector<64x512xf32>
    %5 = tpu.matmul %3, %4, %cst {dimension_numbers = #tpu.dot_dimension_numbers<[1], [0], [0], [1], [0, 0, 1, 1], [], []>} : vector<64x32xbf16>, vector<32x512xbf16>, vector<64x512xf32> -> vector<64x512xf32>
    %c0_4 = arith.constant 0 : index
    %c0_5 = arith.constant 0 : index
    %6 = vector.load %arg4[%c0_4, %c0_5] : memref<1x512xf32, #tpu.memory_space<vmem>>, vector<1x512xf32>
    %7 = vector.broadcast %6 : vector<1x512xf32> to vector<64x512xf32>
    %8 = arith.addf %5, %7 : vector<64x512xf32>
    %c0_6 = arith.constant 0 : index
    %c0_7 = arith.constant 0 : index
    %9 = vector.load %arg6[%c0_6, %c0_7] : memref<64x512xf32, #tpu.memory_space<vmem>>, vector<64x512xf32>
    tpu.vector_store %arg6[%c0_6, %c0_7], %8 {strides = array<i32>} : memref<64x512xf32, #tpu.memory_space<vmem>>, vector<64x512xf32>,
    %c0_8 = arith.constant 0 : index
    %c0_9 = arith.constant 0 : index
    %10 = vector.load %arg3[%c0_8, %c0_9] : memref<128x512xbf16, #tpu.memory_space<vmem>>, vector<128x512xbf16>
    %c0_10 = arith.constant 0 : index
    %c0_11 = arith.constant 0 : index
    %c0_12 = arith.constant 0 : index
    %11 = vector.load %arg7[%c0_10, %c0_11, %c0_12] : memref<2x8x128xf32, #tpu.memory_space<vmem>>, vector<1x8x128xf32>
    %12 = vector.shape_cast %11 : vector<1x8x128xf32> to vector<8x128xf32>
    %c1 = arith.constant 1 : index
    %c0_13 = arith.constant 0 : index
    %c0_14 = arith.constant 0 : index
    %13 = vector.load %arg7[%c1, %c0_13, %c0_14] : memref<2x8x128xf32, #tpu.memory_space<vmem>>, vector<1x8x128xf32>
    %14 = vector.shape_cast %13 : vector<1x8x128xf32> to vector<8x128xf32>
    %c0_i32_15 = arith.constant 0 : i32
    %c8_i32 = arith.constant 8 : i32
    %15 = arith.muli %c0_i32_15, %c8_i32 : i32
    %16 = tpu.assume_multiple %15, 8 : i32
    %17 = arith.index_cast %16 : i32 to index
    %c0_16 = arith.constant 0 : index
    %18 = vector.load %arg6[%17, %c0_16] : memref<64x512xf32, #tpu.memory_space<vmem>>, vector<8x512xf32>
    %19 = arith.truncf %12 : vector<8x128xf32> to vector<8x128xbf16>
    %cst_17 = arith.constant dense<0.000000e+00> : vector<8x512xf32>
    %20 = tpu.matmul %19, %10, %cst_17 {dimension_numbers = #tpu.dot_dimension_numbers<[1], [0], [0], [1], [0, 0, 1, 1], [], []>} : vector<8x128xbf16>, vector<128x512xbf16>, vector<8x512xf32> -> vector<8x512xf32>
    %21 = arith.addf %18, %20 : vector<8x512xf32>
    %22 = vector.extract_strided_slice %21 {offsets = [0, 0], sizes = [8, 128], strides = [1, 1]} : vector<8x512xf32> to vector<8x128xf32>
    %cst_18 = arith.constant 5.000000e-01 : f32
    %23 = vector.broadcast %cst_18 : f32 to vector<8x128xf32>
    %24 = arith.mulf %23, %22 : vector<8x128xf32>
    %25 = math.tanh %24 : vector<8x128xf32>
    %cst_19 = arith.constant 5.000000e-01 : f32
    %26 = vector.broadcast %cst_19 : f32 to vector<8x128xf32>
    %27 = arith.mulf %26, %25 : vector<8x128xf32>
    %cst_20 = arith.constant 5.000000e-01 : f32
    %28 = vector.broadcast %cst_20 : f32 to vector<8x128xf32>
    %29 = arith.addf %27, %28 : vector<8x128xf32>
    %30 = vector.extract_strided_slice %21 {offsets = [0, 128], sizes = [8, 128], strides = [1, 1]} : vector<8x512xf32> to vector<8x128xf32>
    %cst_21 = arith.constant 5.000000e-01 : f32
    %31 = vector.broadcast %cst_21 : f32 to vector<8x128xf32>
    %32 = arith.mulf %31, %30 : vector<8x128xf32>
    %33 = math.tanh %32 : vector<8x128xf32>
    %cst_22 = arith.constant 5.000000e-01 : f32
    %34 = vector.broadcast %cst_22 : f32 to vector<8x128xf32>
    %35 = arith.mulf %34, %33 : vector<8x128xf32>
    %cst_23 = arith.constant 5.000000e-01 : f32
    %36 = vector.broadcast %cst_23 : f32 to vector<8x128xf32>
    %37 = arith.addf %35, %36 : vector<8x128xf32>
    %38 = vector.extract_strided_slice %21 {offsets = [0, 256], sizes = [8, 128], strides = [1, 1]} : vector<8x512xf32> to vector<8x128xf32>
    %39 = math.tanh %38 : vector<8x128xf32>
    %40 = vector.extract_strided_slice %21 {offsets = [0, 384], sizes = [8, 128], strides = [1, 1]} : vector<8x512xf32> to vector<8x128xf32>
    %cst_24 = arith.constant 5.000000e-01 : f32
    %41 = vector.broadcast %cst_24 : f32 to vector<8x128xf32>
    %42 = arith.mulf %41, %40 : vector<8x128xf32>
    %43 = math.tanh %42 : vector<8x128xf32>
    %cst_25 = arith.constant 5.000000e-01 : f32
    %44 = vector.broadcast %cst_25 : f32 to vector<8x128xf32>
    %45 = arith.mulf %44, %43 : vector<8x128xf32>
    %cst_26 = arith.constant 5.000000e-01 : f32
    %46 = vector.broadcast %cst_26 : f32 to vector<8x128xf32>
    %47 = arith.addf %45, %46 : vector<8x128xf32>
    %48 = arith.mulf %37, %14 : vector<8x128xf32>
    %49 = arith.mulf %29, %39 : vector<8x128xf32>
    %50 = arith.addf %48, %49 : vector<8x128xf32>
    %51 = math.tanh %50 : vector<8x128xf32>
    %52 = arith.mulf %47, %51 : vector<8x128xf32>
    %53 = arith.truncf %52 : vector<8x128xf32> to vector<8x128xbf16>
    %54 = arith.index_cast %16 : i32 to index
    %c0_27 = arith.constant 0 : index
    %55 = vector.load %arg5[%54, %c0_27] : memref<64x128xbf16, #tpu.memory_space<vmem>>, vector<8x128xbf16>
    tpu.vector_store %arg5[%54, %c0_27], %53 {strides = array<i32>} : memref<64x128xbf16, #tpu.memory_space<vmem>>, vector<8x128xbf16>,
    %c1_i32 = arith.constant 1 : i32
    %c8_i32_28 = arith.constant 8 : i32
    %56 = arith.muli %c1_i32, %c8_i32_28 : i32
    %57 = tpu.assume_multiple %56, 8 : i32
    %58 = arith.index_cast %57 : i32 to index
    %c0_29 = arith.constant 0 : index
    %59 = vector.load %arg6[%58, %c0_29] : memref<64x512xf32, #tpu.memory_space<vmem>>, vector<8x512xf32>
    %60 = arith.truncf %52 : vector<8x128xf32> to vector<8x128xbf16>
    %cst_30 = arith.constant dense<0.000000e+00> : vector<8x512xf32>
    %61 = tpu.matmul %60, %10, %cst_30 {dimension_numbers = #tpu.dot_dimension_numbers<[1], [0], [0], [1], [0, 0, 1, 1], [], []>} : vector<8x128xbf16>, vector<128x512xbf16>, vector<8x512xf32> -> vector<8x512xf32>
    %62 = arith.addf %59, %61 : vector<8x512xf32>
    %63 = vector.extract_strided_slice %62 {offsets = [0, 0], sizes = [8, 128], strides = [1, 1]} : vector<8x512xf32> to vector<8x128xf32>
    %cst_31 = arith.constant 5.000000e-01 : f32
    %64 = vector.broadcast %cst_31 : f32 to vector<8x128xf32>
    %65 = arith.mulf %64, %63 : vector<8x128xf32>
    %66 = math.tanh %65 : vector<8x128xf32>
    %cst_32 = arith.constant 5.000000e-01 : f32
    %67 = vector.broadcast %cst_32 : f32 to vector<8x128xf32>
    %68 = arith.mulf %67, %66 : vector<8x128xf32>
    %cst_33 = arith.constant 5.000000e-01 : f32
    %69 = vector.broadcast %cst_33 : f32 to vector<8x128xf32>
    %70 = arith.addf %68, %69 : vector<8x128xf32>
    %71 = vector.extract_strided_slice %62 {offsets = [0, 128], sizes = [8, 128], strides = [1, 1]} : vector<8x512xf32> to vector<8x128xf32>
    %cst_34 = arith.constant 5.000000e-01 : f32
    %72 = vector.broadcast %cst_34 : f32 to vector<8x128xf32>
    %73 = arith.mulf %72, %71 : vector<8x128xf32>
    %74 = math.tanh %73 : vector<8x128xf32>
    %cst_35 = arith.constant 5.000000e-01 : f32
    %75 = vector.broadcast %cst_35 : f32 to vector<8x128xf32>
    %76 = arith.mulf %75, %74 : vector<8x128xf32>
    %cst_36 = arith.constant 5.000000e-01 : f32
    %77 = vector.broadcast %cst_36 : f32 to vector<8x128xf32>
    %78 = arith.addf %76, %77 : vector<8x128xf32>
    %79 = vector.extract_strided_slice %62 {offsets = [0, 256], sizes = [8, 128], strides = [1, 1]} : vector<8x512xf32> to vector<8x128xf32>
    %80 = math.tanh %79 : vector<8x128xf32>
    %81 = vector.extract_strided_slice %62 {offsets = [0, 384], sizes = [8, 128], strides = [1, 1]} : vector<8x512xf32> to vector<8x128xf32>
    %cst_37 = arith.constant 5.000000e-01 : f32
    %82 = vector.broadcast %cst_37 : f32 to vector<8x128xf32>
    %83 = arith.mulf %82, %81 : vector<8x128xf32>
    %84 = math.tanh %83 : vector<8x128xf32>
    %cst_38 = arith.constant 5.000000e-01 : f32
    %85 = vector.broadcast %cst_38 : f32 to vector<8x128xf32>
    %86 = arith.mulf %85, %84 : vector<8x128xf32>
    %cst_39 = arith.constant 5.000000e-01 : f32
    %87 = vector.broadcast %cst_39 : f32 to vector<8x128xf32>
    %88 = arith.addf %86, %87 : vector<8x128xf32>
    %89 = arith.mulf %78, %50 : vector<8x128xf32>
    %90 = arith.mulf %70, %80 : vector<8x128xf32>
    %91 = arith.addf %89, %90 : vector<8x128xf32>
    %92 = math.tanh %91 : vector<8x128xf32>
    %93 = arith.mulf %88, %92 : vector<8x128xf32>
    %94 = arith.truncf %93 : vector<8x128xf32> to vector<8x128xbf16>
    %95 = arith.index_cast %57 : i32 to index
    %c0_40 = arith.constant 0 : index
    %96 = vector.load %arg5[%95, %c0_40] : memref<64x128xbf16, #tpu.memory_space<vmem>>, vector<8x128xbf16>
    tpu.vector_store %arg5[%95, %c0_40], %94 {strides = array<i32>} : memref<64x128xbf16, #tpu.memory_space<vmem>>, vector<8x128xbf16>,
    %c2_i32 = arith.constant 2 : i32
    %c8_i32_41 = arith.constant 8 : i32
    %97 = arith.muli %c2_i32, %c8_i32_41 : i32
    %98 = tpu.assume_multiple %97, 8 : i32
    %99 = arith.index_cast %98 : i32 to index
    %c0_42 = arith.constant 0 : index
    %100 = vector.load %arg6[%99, %c0_42] : memref<64x512xf32, #tpu.memory_space<vmem>>, vector<8x512xf32>
    %101 = arith.truncf %93 : vector<8x128xf32> to vector<8x128xbf16>
    %cst_43 = arith.constant dense<0.000000e+00> : vector<8x512xf32>
    %102 = tpu.matmul %101, %10, %cst_43 {dimension_numbers = #tpu.dot_dimension_numbers<[1], [0], [0], [1], [0, 0, 1, 1], [], []>} : vector<8x128xbf16>, vector<128x512xbf16>, vector<8x512xf32> -> vector<8x512xf32>
    %103 = arith.addf %100, %102 : vector<8x512xf32>
    %104 = vector.extract_strided_slice %103 {offsets = [0, 0], sizes = [8, 128], strides = [1, 1]} : vector<8x512xf32> to vector<8x128xf32>
    %cst_44 = arith.constant 5.000000e-01 : f32
    %105 = vector.broadcast %cst_44 : f32 to vector<8x128xf32>
    %106 = arith.mulf %105, %104 : vector<8x128xf32>
    %107 = math.tanh %106 : vector<8x128xf32>
    %cst_45 = arith.constant 5.000000e-01 : f32
    %108 = vector.broadcast %cst_45 : f32 to vector<8x128xf32>
    %109 = arith.mulf %108, %107 : vector<8x128xf32>
    %cst_46 = arith.constant 5.000000e-01 : f32
    %110 = vector.broadcast %cst_46 : f32 to vector<8x128xf32>
    %111 = arith.addf %109, %110 : vector<8x128xf32>
    %112 = vector.extract_strided_slice %103 {offsets = [0, 128], sizes = [8, 128], strides = [1, 1]} : vector<8x512xf32> to vector<8x128xf32>
    %cst_47 = arith.constant 5.000000e-01 : f32
    %113 = vector.broadcast %cst_47 : f32 to vector<8x128xf32>
    %114 = arith.mulf %113, %112 : vector<8x128xf32>
    %115 = math.tanh %114 : vector<8x128xf32>
    %cst_48 = arith.constant 5.000000e-01 : f32
    %116 = vector.broadcast %cst_48 : f32 to vector<8x128xf32>
    %117 = arith.mulf %116, %115 : vector<8x128xf32>
    %cst_49 = arith.constant 5.000000e-01 : f32
    %118 = vector.broadcast %cst_49 : f32 to vector<8x128xf32>
    %119 = arith.addf %117, %118 : vector<8x128xf32>
    %120 = vector.extract_strided_slice %103 {offsets = [0, 256], sizes = [8, 128], strides = [1, 1]} : vector<8x512xf32> to vector<8x128xf32>
    %121 = math.tanh %120 : vector<8x128xf32>
    %122 = vector.extract_strided_slice %103 {offsets = [0, 384], sizes = [8, 128], strides = [1, 1]} : vector<8x512xf32> to vector<8x128xf32>
    %cst_50 = arith.constant 5.000000e-01 : f32
    %123 = vector.broadcast %cst_50 : f32 to vector<8x128xf32>
    %124 = arith.mulf %123, %122 : vector<8x128xf32>
    %125 = math.tanh %124 : vector<8x128xf32>
    %cst_51 = arith.constant 5.000000e-01 : f32
    %126 = vector.broadcast %cst_51 : f32 to vector<8x128xf32>
    %127 = arith.mulf %126, %125 : vector<8x128xf32>
    %cst_52 = arith.constant 5.000000e-01 : f32
    %128 = vector.broadcast %cst_52 : f32 to vector<8x128xf32>
    %129 = arith.addf %127, %128 : vector<8x128xf32>
    %130 = arith.mulf %119, %91 : vector<8x128xf32>
    %131 = arith.mulf %111, %121 : vector<8x128xf32>
    %132 = arith.addf %130, %131 : vector<8x128xf32>
    %133 = math.tanh %132 : vector<8x128xf32>
    %134 = arith.mulf %129, %133 : vector<8x128xf32>
    %135 = arith.truncf %134 : vector<8x128xf32> to vector<8x128xbf16>
    %136 = arith.index_cast %98 : i32 to index
    %c0_53 = arith.constant 0 : index
    %137 = vector.load %arg5[%136, %c0_53] : memref<64x128xbf16, #tpu.memory_space<vmem>>, vector<8x128xbf16>
    tpu.vector_store %arg5[%136, %c0_53], %135 {strides = array<i32>} : memref<64x128xbf16, #tpu.memory_space<vmem>>, vector<8x128xbf16>,
    %c3_i32 = arith.constant 3 : i32
    %c8_i32_54 = arith.constant 8 : i32
    %138 = arith.muli %c3_i32, %c8_i32_54 : i32
    %139 = tpu.assume_multiple %138, 8 : i32
    %140 = arith.index_cast %139 : i32 to index
    %c0_55 = arith.constant 0 : index
    %141 = vector.load %arg6[%140, %c0_55] : memref<64x512xf32, #tpu.memory_space<vmem>>, vector<8x512xf32>
    %142 = arith.truncf %134 : vector<8x128xf32> to vector<8x128xbf16>
    %cst_56 = arith.constant dense<0.000000e+00> : vector<8x512xf32>
    %143 = tpu.matmul %142, %10, %cst_56 {dimension_numbers = #tpu.dot_dimension_numbers<[1], [0], [0], [1], [0, 0, 1, 1], [], []>} : vector<8x128xbf16>, vector<128x512xbf16>, vector<8x512xf32> -> vector<8x512xf32>
    %144 = arith.addf %141, %143 : vector<8x512xf32>
    %145 = vector.extract_strided_slice %144 {offsets = [0, 0], sizes = [8, 128], strides = [1, 1]} : vector<8x512xf32> to vector<8x128xf32>
    %cst_57 = arith.constant 5.000000e-01 : f32
    %146 = vector.broadcast %cst_57 : f32 to vector<8x128xf32>
    %147 = arith.mulf %146, %145 : vector<8x128xf32>
    %148 = math.tanh %147 : vector<8x128xf32>
    %cst_58 = arith.constant 5.000000e-01 : f32
    %149 = vector.broadcast %cst_58 : f32 to vector<8x128xf32>
    %150 = arith.mulf %149, %148 : vector<8x128xf32>
    %cst_59 = arith.constant 5.000000e-01 : f32
    %151 = vector.broadcast %cst_59 : f32 to vector<8x128xf32>
    %152 = arith.addf %150, %151 : vector<8x128xf32>
    %153 = vector.extract_strided_slice %144 {offsets = [0, 128], sizes = [8, 128], strides = [1, 1]} : vector<8x512xf32> to vector<8x128xf32>
    %cst_60 = arith.constant 5.000000e-01 : f32
    %154 = vector.broadcast %cst_60 : f32 to vector<8x128xf32>
    %155 = arith.mulf %154, %153 : vector<8x128xf32>
    %156 = math.tanh %155 : vector<8x128xf32>
    %cst_61 = arith.constant 5.000000e-01 : f32
    %157 = vector.broadcast %cst_61 : f32 to vector<8x128xf32>
    %158 = arith.mulf %157, %156 : vector<8x128xf32>
    %cst_62 = arith.constant 5.000000e-01 : f32
    %159 = vector.broadcast %cst_62 : f32 to vector<8x128xf32>
    %160 = arith.addf %158, %159 : vector<8x128xf32>
    %161 = vector.extract_strided_slice %144 {offsets = [0, 256], sizes = [8, 128], strides = [1, 1]} : vector<8x512xf32> to vector<8x128xf32>
    %162 = math.tanh %161 : vector<8x128xf32>
    %163 = vector.extract_strided_slice %144 {offsets = [0, 384], sizes = [8, 128], strides = [1, 1]} : vector<8x512xf32> to vector<8x128xf32>
    %cst_63 = arith.constant 5.000000e-01 : f32
    %164 = vector.broadcast %cst_63 : f32 to vector<8x128xf32>
    %165 = arith.mulf %164, %163 : vector<8x128xf32>
    %166 = math.tanh %165 : vector<8x128xf32>
    %cst_64 = arith.constant 5.000000e-01 : f32
    %167 = vector.broadcast %cst_64 : f32 to vector<8x128xf32>
    %168 = arith.mulf %167, %166 : vector<8x128xf32>
    %cst_65 = arith.constant 5.000000e-01 : f32
    %169 = vector.broadcast %cst_65 : f32 to vector<8x128xf32>
    %170 = arith.addf %168, %169 : vector<8x128xf32>
    %171 = arith.mulf %160, %132 : vector<8x128xf32>
    %172 = arith.mulf %152, %162 : vector<8x128xf32>
    %173 = arith.addf %171, %172 : vector<8x128xf32>
    %174 = math.tanh %173 : vector<8x128xf32>
    %175 = arith.mulf %170, %174 : vector<8x128xf32>
    %176 = arith.truncf %175 : vector<8x128xf32> to vector<8x128xbf16>
    %177 = arith.index_cast %139 : i32 to index
    %c0_66 = arith.constant 0 : index
    %178 = vector.load %arg5[%177, %c0_66] : memref<64x128xbf16, #tpu.memory_space<vmem>>, vector<8x128xbf16>
    tpu.vector_store %arg5[%177, %c0_66], %176 {strides = array<i32>} : memref<64x128xbf16, #tpu.memory_space<vmem>>, vector<8x128xbf16>,
    %c4_i32 = arith.constant 4 : i32
    %c8_i32_67 = arith.constant 8 : i32
    %179 = arith.muli %c4_i32, %c8_i32_67 : i32
    %180 = tpu.assume_multiple %179, 8 : i32
    %181 = arith.index_cast %180 : i32 to index
    %c0_68 = arith.constant 0 : index
    %182 = vector.load %arg6[%181, %c0_68] : memref<64x512xf32, #tpu.memory_space<vmem>>, vector<8x512xf32>
    %183 = arith.truncf %175 : vector<8x128xf32> to vector<8x128xbf16>
    %cst_69 = arith.constant dense<0.000000e+00> : vector<8x512xf32>
    %184 = tpu.matmul %183, %10, %cst_69 {dimension_numbers = #tpu.dot_dimension_numbers<[1], [0], [0], [1], [0, 0, 1, 1], [], []>} : vector<8x128xbf16>, vector<128x512xbf16>, vector<8x512xf32> -> vector<8x512xf32>
    %185 = arith.addf %182, %184 : vector<8x512xf32>
    %186 = vector.extract_strided_slice %185 {offsets = [0, 0], sizes = [8, 128], strides = [1, 1]} : vector<8x512xf32> to vector<8x128xf32>
    %cst_70 = arith.constant 5.000000e-01 : f32
    %187 = vector.broadcast %cst_70 : f32 to vector<8x128xf32>
    %188 = arith.mulf %187, %186 : vector<8x128xf32>
    %189 = math.tanh %188 : vector<8x128xf32>
    %cst_71 = arith.constant 5.000000e-01 : f32
    %190 = vector.broadcast %cst_71 : f32 to vector<8x128xf32>
    %191 = arith.mulf %190, %189 : vector<8x128xf32>
    %cst_72 = arith.constant 5.000000e-01 : f32
    %192 = vector.broadcast %cst_72 : f32 to vector<8x128xf32>
    %193 = arith.addf %191, %192 : vector<8x128xf32>
    %194 = vector.extract_strided_slice %185 {offsets = [0, 128], sizes = [8, 128], strides = [1, 1]} : vector<8x512xf32> to vector<8x128xf32>
    %cst_73 = arith.constant 5.000000e-01 : f32
    %195 = vector.broadcast %cst_73 : f32 to vector<8x128xf32>
    %196 = arith.mulf %195, %194 : vector<8x128xf32>
    %197 = math.tanh %196 : vector<8x128xf32>
    %cst_74 = arith.constant 5.000000e-01 : f32
    %198 = vector.broadcast %cst_74 : f32 to vector<8x128xf32>
    %199 = arith.mulf %198, %197 : vector<8x128xf32>
    %cst_75 = arith.constant 5.000000e-01 : f32
    %200 = vector.broadcast %cst_75 : f32 to vector<8x128xf32>
    %201 = arith.addf %199, %200 : vector<8x128xf32>
    %202 = vector.extract_strided_slice %185 {offsets = [0, 256], sizes = [8, 128], strides = [1, 1]} : vector<8x512xf32> to vector<8x128xf32>
    %203 = math.tanh %202 : vector<8x128xf32>
    %204 = vector.extract_strided_slice %185 {offsets = [0, 384], sizes = [8, 128], strides = [1, 1]} : vector<8x512xf32> to vector<8x128xf32>
    %cst_76 = arith.constant 5.000000e-01 : f32
    %205 = vector.broadcast %cst_76 : f32 to vector<8x128xf32>
    %206 = arith.mulf %205, %204 : vector<8x128xf32>
    %207 = math.tanh %206 : vector<8x128xf32>
    %cst_77 = arith.constant 5.000000e-01 : f32
    %208 = vector.broadcast %cst_77 : f32 to vector<8x128xf32>
    %209 = arith.mulf %208, %207 : vector<8x128xf32>
    %cst_78 = arith.constant 5.000000e-01 : f32
    %210 = vector.broadcast %cst_78 : f32 to vector<8x128xf32>
    %211 = arith.addf %209, %210 : vector<8x128xf32>
    %212 = arith.mulf %201, %173 : vector<8x128xf32>
    %213 = arith.mulf %193, %203 : vector<8x128xf32>
    %214 = arith.addf %212, %213 : vector<8x128xf32>
    %215 = math.tanh %214 : vector<8x128xf32>
    %216 = arith.mulf %211, %215 : vector<8x128xf32>
    %217 = arith.truncf %216 : vector<8x128xf32> to vector<8x128xbf16>
    %218 = arith.index_cast %180 : i32 to index
    %c0_79 = arith.constant 0 : index
    %219 = vector.load %arg5[%218, %c0_79] : memref<64x128xbf16, #tpu.memory_space<vmem>>, vector<8x128xbf16>
    tpu.vector_store %arg5[%218, %c0_79], %217 {strides = array<i32>} : memref<64x128xbf16, #tpu.memory_space<vmem>>, vector<8x128xbf16>,
    %c5_i32 = arith.constant 5 : i32
    %c8_i32_80 = arith.constant 8 : i32
    %220 = arith.muli %c5_i32, %c8_i32_80 : i32
    %221 = tpu.assume_multiple %220, 8 : i32
    %222 = arith.index_cast %221 : i32 to index
    %c0_81 = arith.constant 0 : index
    %223 = vector.load %arg6[%222, %c0_81] : memref<64x512xf32, #tpu.memory_space<vmem>>, vector<8x512xf32>
    %224 = arith.truncf %216 : vector<8x128xf32> to vector<8x128xbf16>
    %cst_82 = arith.constant dense<0.000000e+00> : vector<8x512xf32>
    %225 = tpu.matmul %224, %10, %cst_82 {dimension_numbers = #tpu.dot_dimension_numbers<[1], [0], [0], [1], [0, 0, 1, 1], [], []>} : vector<8x128xbf16>, vector<128x512xbf16>, vector<8x512xf32> -> vector<8x512xf32>
    %226 = arith.addf %223, %225 : vector<8x512xf32>
    %227 = vector.extract_strided_slice %226 {offsets = [0, 0], sizes = [8, 128], strides = [1, 1]} : vector<8x512xf32> to vector<8x128xf32>
    %cst_83 = arith.constant 5.000000e-01 : f32
    %228 = vector.broadcast %cst_83 : f32 to vector<8x128xf32>
    %229 = arith.mulf %228, %227 : vector<8x128xf32>
    %230 = math.tanh %229 : vector<8x128xf32>
    %cst_84 = arith.constant 5.000000e-01 : f32
    %231 = vector.broadcast %cst_84 : f32 to vector<8x128xf32>
    %232 = arith.mulf %231, %230 : vector<8x128xf32>
    %cst_85 = arith.constant 5.000000e-01 : f32
    %233 = vector.broadcast %cst_85 : f32 to vector<8x128xf32>
    %234 = arith.addf %232, %233 : vector<8x128xf32>
    %235 = vector.extract_strided_slice %226 {offsets = [0, 128], sizes = [8, 128], strides = [1, 1]} : vector<8x512xf32> to vector<8x128xf32>
    %cst_86 = arith.constant 5.000000e-01 : f32
    %236 = vector.broadcast %cst_86 : f32 to vector<8x128xf32>
    %237 = arith.mulf %236, %235 : vector<8x128xf32>
    %238 = math.tanh %237 : vector<8x128xf32>
    %cst_87 = arith.constant 5.000000e-01 : f32
    %239 = vector.broadcast %cst_87 : f32 to vector<8x128xf32>
    %240 = arith.mulf %239, %238 : vector<8x128xf32>
    %cst_88 = arith.constant 5.000000e-01 : f32
    %241 = vector.broadcast %cst_88 : f32 to vector<8x128xf32>
    %242 = arith.addf %240, %241 : vector<8x128xf32>
    %243 = vector.extract_strided_slice %226 {offsets = [0, 256], sizes = [8, 128], strides = [1, 1]} : vector<8x512xf32> to vector<8x128xf32>
    %244 = math.tanh %243 : vector<8x128xf32>
    %245 = vector.extract_strided_slice %226 {offsets = [0, 384], sizes = [8, 128], strides = [1, 1]} : vector<8x512xf32> to vector<8x128xf32>
    %cst_89 = arith.constant 5.000000e-01 : f32
    %246 = vector.broadcast %cst_89 : f32 to vector<8x128xf32>
    %247 = arith.mulf %246, %245 : vector<8x128xf32>
    %248 = math.tanh %247 : vector<8x128xf32>
    %cst_90 = arith.constant 5.000000e-01 : f32
    %249 = vector.broadcast %cst_90 : f32 to vector<8x128xf32>
    %250 = arith.mulf %249, %248 : vector<8x128xf32>
    %cst_91 = arith.constant 5.000000e-01 : f32
    %251 = vector.broadcast %cst_91 : f32 to vector<8x128xf32>
    %252 = arith.addf %250, %251 : vector<8x128xf32>
    %253 = arith.mulf %242, %214 : vector<8x128xf32>
    %254 = arith.mulf %234, %244 : vector<8x128xf32>
    %255 = arith.addf %253, %254 : vector<8x128xf32>
    %256 = math.tanh %255 : vector<8x128xf32>
    %257 = arith.mulf %252, %256 : vector<8x128xf32>
    %258 = arith.truncf %257 : vector<8x128xf32> to vector<8x128xbf16>
    %259 = arith.index_cast %221 : i32 to index
    %c0_92 = arith.constant 0 : index
    %260 = vector.load %arg5[%259, %c0_92] : memref<64x128xbf16, #tpu.memory_space<vmem>>, vector<8x128xbf16>
    tpu.vector_store %arg5[%259, %c0_92], %258 {strides = array<i32>} : memref<64x128xbf16, #tpu.memory_space<vmem>>, vector<8x128xbf16>,
    %c6_i32 = arith.constant 6 : i32
    %c8_i32_93 = arith.constant 8 : i32
    %261 = arith.muli %c6_i32, %c8_i32_93 : i32
    %262 = tpu.assume_multiple %261, 8 : i32
    %263 = arith.index_cast %262 : i32 to index
    %c0_94 = arith.constant 0 : index
    %264 = vector.load %arg6[%263, %c0_94] : memref<64x512xf32, #tpu.memory_space<vmem>>, vector<8x512xf32>
    %265 = arith.truncf %257 : vector<8x128xf32> to vector<8x128xbf16>
    %cst_95 = arith.constant dense<0.000000e+00> : vector<8x512xf32>
    %266 = tpu.matmul %265, %10, %cst_95 {dimension_numbers = #tpu.dot_dimension_numbers<[1], [0], [0], [1], [0, 0, 1, 1], [], []>} : vector<8x128xbf16>, vector<128x512xbf16>, vector<8x512xf32> -> vector<8x512xf32>
    %267 = arith.addf %264, %266 : vector<8x512xf32>
    %268 = vector.extract_strided_slice %267 {offsets = [0, 0], sizes = [8, 128], strides = [1, 1]} : vector<8x512xf32> to vector<8x128xf32>
    %cst_96 = arith.constant 5.000000e-01 : f32
    %269 = vector.broadcast %cst_96 : f32 to vector<8x128xf32>
    %270 = arith.mulf %269, %268 : vector<8x128xf32>
    %271 = math.tanh %270 : vector<8x128xf32>
    %cst_97 = arith.constant 5.000000e-01 : f32
    %272 = vector.broadcast %cst_97 : f32 to vector<8x128xf32>
    %273 = arith.mulf %272, %271 : vector<8x128xf32>
    %cst_98 = arith.constant 5.000000e-01 : f32
    %274 = vector.broadcast %cst_98 : f32 to vector<8x128xf32>
    %275 = arith.addf %273, %274 : vector<8x128xf32>
    %276 = vector.extract_strided_slice %267 {offsets = [0, 128], sizes = [8, 128], strides = [1, 1]} : vector<8x512xf32> to vector<8x128xf32>
    %cst_99 = arith.constant 5.000000e-01 : f32
    %277 = vector.broadcast %cst_99 : f32 to vector<8x128xf32>
    %278 = arith.mulf %277, %276 : vector<8x128xf32>
    %279 = math.tanh %278 : vector<8x128xf32>
    %cst_100 = arith.constant 5.000000e-01 : f32
    %280 = vector.broadcast %cst_100 : f32 to vector<8x128xf32>
    %281 = arith.mulf %280, %279 : vector<8x128xf32>
    %cst_101 = arith.constant 5.000000e-01 : f32
    %282 = vector.broadcast %cst_101 : f32 to vector<8x128xf32>
    %283 = arith.addf %281, %282 : vector<8x128xf32>
    %284 = vector.extract_strided_slice %267 {offsets = [0, 256], sizes = [8, 128], strides = [1, 1]} : vector<8x512xf32> to vector<8x128xf32>
    %285 = math.tanh %284 : vector<8x128xf32>
    %286 = vector.extract_strided_slice %267 {offsets = [0, 384], sizes = [8, 128], strides = [1, 1]} : vector<8x512xf32> to vector<8x128xf32>
    %cst_102 = arith.constant 5.000000e-01 : f32
    %287 = vector.broadcast %cst_102 : f32 to vector<8x128xf32>
    %288 = arith.mulf %287, %286 : vector<8x128xf32>
    %289 = math.tanh %288 : vector<8x128xf32>
    %cst_103 = arith.constant 5.000000e-01 : f32
    %290 = vector.broadcast %cst_103 : f32 to vector<8x128xf32>
    %291 = arith.mulf %290, %289 : vector<8x128xf32>
    %cst_104 = arith.constant 5.000000e-01 : f32
    %292 = vector.broadcast %cst_104 : f32 to vector<8x128xf32>
    %293 = arith.addf %291, %292 : vector<8x128xf32>
    %294 = arith.mulf %283, %255 : vector<8x128xf32>
    %295 = arith.mulf %275, %285 : vector<8x128xf32>
    %296 = arith.addf %294, %295 : vector<8x128xf32>
    %297 = math.tanh %296 : vector<8x128xf32>
    %298 = arith.mulf %293, %297 : vector<8x128xf32>
    %299 = arith.truncf %298 : vector<8x128xf32> to vector<8x128xbf16>
    %300 = arith.index_cast %262 : i32 to index
    %c0_105 = arith.constant 0 : index
    %301 = vector.load %arg5[%300, %c0_105] : memref<64x128xbf16, #tpu.memory_space<vmem>>, vector<8x128xbf16>
    tpu.vector_store %arg5[%300, %c0_105], %299 {strides = array<i32>} : memref<64x128xbf16, #tpu.memory_space<vmem>>, vector<8x128xbf16>,
    %c7_i32 = arith.constant 7 : i32
    %c8_i32_106 = arith.constant 8 : i32
    %302 = arith.muli %c7_i32, %c8_i32_106 : i32
    %303 = tpu.assume_multiple %302, 8 : i32
    %304 = arith.index_cast %303 : i32 to index
    %c0_107 = arith.constant 0 : index
    %305 = vector.load %arg6[%304, %c0_107] : memref<64x512xf32, #tpu.memory_space<vmem>>, vector<8x512xf32>
    %306 = arith.truncf %298 : vector<8x128xf32> to vector<8x128xbf16>
    %cst_108 = arith.constant dense<0.000000e+00> : vector<8x512xf32>
    %307 = tpu.matmul %306, %10, %cst_108 {dimension_numbers = #tpu.dot_dimension_numbers<[1], [0], [0], [1], [0, 0, 1, 1], [], []>} : vector<8x128xbf16>, vector<128x512xbf16>, vector<8x512xf32> -> vector<8x512xf32>
    %308 = arith.addf %305, %307 : vector<8x512xf32>
    %309 = vector.extract_strided_slice %308 {offsets = [0, 0], sizes = [8, 128], strides = [1, 1]} : vector<8x512xf32> to vector<8x128xf32>
    %cst_109 = arith.constant 5.000000e-01 : f32
    %310 = vector.broadcast %cst_109 : f32 to vector<8x128xf32>
    %311 = arith.mulf %310, %309 : vector<8x128xf32>
    %312 = math.tanh %311 : vector<8x128xf32>
    %cst_110 = arith.constant 5.000000e-01 : f32
    %313 = vector.broadcast %cst_110 : f32 to vector<8x128xf32>
    %314 = arith.mulf %313, %312 : vector<8x128xf32>
    %cst_111 = arith.constant 5.000000e-01 : f32
    %315 = vector.broadcast %cst_111 : f32 to vector<8x128xf32>
    %316 = arith.addf %314, %315 : vector<8x128xf32>
    %317 = vector.extract_strided_slice %308 {offsets = [0, 128], sizes = [8, 128], strides = [1, 1]} : vector<8x512xf32> to vector<8x128xf32>
    %cst_112 = arith.constant 5.000000e-01 : f32
    %318 = vector.broadcast %cst_112 : f32 to vector<8x128xf32>
    %319 = arith.mulf %318, %317 : vector<8x128xf32>
    %320 = math.tanh %319 : vector<8x128xf32>
    %cst_113 = arith.constant 5.000000e-01 : f32
    %321 = vector.broadcast %cst_113 : f32 to vector<8x128xf32>
    %322 = arith.mulf %321, %320 : vector<8x128xf32>
    %cst_114 = arith.constant 5.000000e-01 : f32
    %323 = vector.broadcast %cst_114 : f32 to vector<8x128xf32>
    %324 = arith.addf %322, %323 : vector<8x128xf32>
    %325 = vector.extract_strided_slice %308 {offsets = [0, 256], sizes = [8, 128], strides = [1, 1]} : vector<8x512xf32> to vector<8x128xf32>
    %326 = math.tanh %325 : vector<8x128xf32>
    %327 = vector.extract_strided_slice %308 {offsets = [0, 384], sizes = [8, 128], strides = [1, 1]} : vector<8x512xf32> to vector<8x128xf32>
    %cst_115 = arith.constant 5.000000e-01 : f32
    %328 = vector.broadcast %cst_115 : f32 to vector<8x128xf32>
    %329 = arith.mulf %328, %327 : vector<8x128xf32>
    %330 = math.tanh %329 : vector<8x128xf32>
    %cst_116 = arith.constant 5.000000e-01 : f32
    %331 = vector.broadcast %cst_116 : f32 to vector<8x128xf32>
    %332 = arith.mulf %331, %330 : vector<8x128xf32>
    %cst_117 = arith.constant 5.000000e-01 : f32
    %333 = vector.broadcast %cst_117 : f32 to vector<8x128xf32>
    %334 = arith.addf %332, %333 : vector<8x128xf32>
    %335 = arith.mulf %324, %296 : vector<8x128xf32>
    %336 = arith.mulf %316, %326 : vector<8x128xf32>
    %337 = arith.addf %335, %336 : vector<8x128xf32>
    %338 = math.tanh %337 : vector<8x128xf32>
    %339 = arith.mulf %334, %338 : vector<8x128xf32>
    %340 = arith.truncf %339 : vector<8x128xf32> to vector<8x128xbf16>
    %341 = arith.index_cast %303 : i32 to index
    %c0_118 = arith.constant 0 : index
    %342 = vector.load %arg5[%341, %c0_118] : memref<64x128xbf16, #tpu.memory_space<vmem>>, vector<8x128xbf16>
    tpu.vector_store %arg5[%341, %c0_118], %340 {strides = array<i32>} : memref<64x128xbf16, #tpu.memory_space<vmem>>, vector<8x128xbf16>,
    %c8_i32_119 = arith.constant 8 : i32
    %c0_120 = arith.constant 0 : index
    %c0_121 = arith.constant 0 : index
    %c0_122 = arith.constant 0 : index
    %343 = vector.load %arg7[%c0_120, %c0_121, %c0_122] : memref<2x8x128xf32, #tpu.memory_space<vmem>>, vector<1x8x128xf32>
    %344 = vector.shape_cast %343 : vector<1x8x128xf32> to vector<8x128xf32>
    %345 = vector.shape_cast %339 : vector<8x128xf32> to vector<1x8x128xf32>
    tpu.vector_store %arg7[%c0_120, %c0_121, %c0_122], %345 {strides = array<i32>} : memref<2x8x128xf32, #tpu.memory_space<vmem>>, vector<1x8x128xf32>,
    %c1_123 = arith.constant 1 : index
    %c0_124 = arith.constant 0 : index
    %c0_125 = arith.constant 0 : index
    %346 = vector.load %arg7[%c1_123, %c0_124, %c0_125] : memref<2x8x128xf32, #tpu.memory_space<vmem>>, vector<1x8x128xf32>
    %347 = vector.shape_cast %346 : vector<1x8x128xf32> to vector<8x128xf32>
    %348 = vector.shape_cast %337 : vector<8x128xf32> to vector<1x8x128xf32>
    tpu.vector_store %arg7[%c1_123, %c0_124, %c0_125], %348 {strides = array<i32>} : memref<2x8x128xf32, #tpu.memory_space<vmem>>, vector<1x8x128xf32>,
    return
  }
  func.func @transform_0(%arg0: i32) -> (i32, i32) {
    %c0_i32 = arith.constant 0 : i32
    %c0_i32_0 = arith.constant 0 : i32
    return %arg0, %c0_i32 : i32, i32
  }
  func.func @transform_1(%arg0: i32) -> (i32, i32) {
    %c0_i32 = arith.constant 0 : i32
    %c0_i32_0 = arith.constant 0 : i32
    %c0_i32_1 = arith.constant 0 : i32
    return %c0_i32, %c0_i32_0 : i32, i32
  }
  func.func @transform_2(%arg0: i32) -> (i32, i32) {
    %c0_i32 = arith.constant 0 : i32
    %c0_i32_0 = arith.constant 0 : i32
    %c0_i32_1 = arith.constant 0 : i32
    return %c0_i32, %c0_i32_0 : i32, i32
  }
  func.func @transform_3(%arg0: i32) -> (i32, i32) {
    %c0_i32 = arith.constant 0 : i32
    %c0_i32_0 = arith.constant 0 : i32
    %c0_i32_1 = arith.constant 0 : i32
    return %c0_i32, %c0_i32_0 : i32, i32
  }
  func.func @transform_4(%arg0: i32) -> (i32, i32) {
    %c0_i32 = arith.constant 0 : i32
    %c0_i32_0 = arith.constant 0 : i32
    return %arg0, %c0_i32 : i32, i32
  }
}

module attributes {stable_mosaic.version = 11 : i64} {
  func.func @_fc_kernel(%arg0: i32, %arg1: i32, %arg2: memref<1x16x128xbf16, #tpu.memory_space<vmem>>, %arg3: memref<128x128xbf16, #tpu.memory_space<vmem>>, %arg4: memref<1x128xf32, #tpu.memory_space<vmem>>, %arg5: memref<1x16x128xf32, #tpu.memory_space<vmem>>) attributes {dimension_semantics = [#tpu.dimension_semantics<parallel>, #tpu.dimension_semantics<parallel>], iteration_bounds = array<i64: 2, 8>, scalar_prefetch = 0 : i64, scratch_operands = 0 : i64, tpu.core_type = #tpu.core_type<tc>, window_params = [{transform_indices = @transform_0, window_bounds = array<i64: 1, 16, 128>}, {transform_indices = @transform_1, window_bounds = array<i64: 128, 128>}, {transform_indices = @transform_2, window_bounds = array<i64: 1, 128>}, {transform_indices = @transform_3, window_bounds = array<i64: 1, 16, 128>}]} {
    %c0 = arith.constant 0 : index
    %c0_0 = arith.constant 0 : index
    %c0_1 = arith.constant 0 : index
    %0 = vector.load %arg2[%c0, %c0_0, %c0_1] : memref<1x16x128xbf16, #tpu.memory_space<vmem>>, vector<1x16x128xbf16>
    %1 = vector.shape_cast %0 : vector<1x16x128xbf16> to vector<16x128xbf16>
    %c0_2 = arith.constant 0 : index
    %c0_3 = arith.constant 0 : index
    %2 = vector.load %arg3[%c0_2, %c0_3] : memref<128x128xbf16, #tpu.memory_space<vmem>>, vector<128x128xbf16>
    %cst = arith.constant dense<0.000000e+00> : vector<16x128xf32>
    %3 = tpu.matmul %1, %2, %cst {dimension_numbers = #tpu.dot_dimension_numbers<[1], [0], [0], [1], [0, 0, 1, 1], [], []>} : vector<16x128xbf16>, vector<128x128xbf16>, vector<16x128xf32> -> vector<16x128xf32>
    %c0_4 = arith.constant 0 : index
    %c0_5 = arith.constant 0 : index
    %4 = vector.load %arg4[%c0_4, %c0_5] : memref<1x128xf32, #tpu.memory_space<vmem>>, vector<1x128xf32>
    %5 = vector.broadcast %4 : vector<1x128xf32> to vector<16x128xf32>
    %6 = arith.addf %3, %5 : vector<16x128xf32>
    %c0_6 = arith.constant 0 : index
    %c0_7 = arith.constant 0 : index
    %c0_8 = arith.constant 0 : index
    %7 = vector.load %arg5[%c0_6, %c0_7, %c0_8] : memref<1x16x128xf32, #tpu.memory_space<vmem>>, vector<1x16x128xf32>
    %8 = vector.shape_cast %7 : vector<1x16x128xf32> to vector<16x128xf32>
    %9 = vector.shape_cast %6 : vector<16x128xf32> to vector<1x16x128xf32>
    tpu.vector_store %arg5[%c0_6, %c0_7, %c0_8], %9 {strides = array<i32>} : memref<1x16x128xf32, #tpu.memory_space<vmem>>, vector<1x16x128xf32>,
    return
  }
  func.func @transform_0(%arg0: i32, %arg1: i32) -> (i32, i32, i32) {
    %c0_i32 = arith.constant 0 : i32
    %c0_i32_0 = arith.constant 0 : i32
    %c0_i32_1 = arith.constant 0 : i32
    return %arg1, %c0_i32, %c0_i32_0 : i32, i32, i32
  }
  func.func @transform_1(%arg0: i32, %arg1: i32) -> (i32, i32) {
    %c0_i32 = arith.constant 0 : i32
    %c0_i32_0 = arith.constant 0 : i32
    return %c0_i32, %arg0 : i32, i32
  }
  func.func @transform_2(%arg0: i32, %arg1: i32) -> (i32, i32) {
    %c0_i32 = arith.constant 0 : i32
    %c0_i32_0 = arith.constant 0 : i32
    return %c0_i32, %arg0 : i32, i32
  }
  func.func @transform_3(%arg0: i32, %arg1: i32) -> (i32, i32, i32) {
    %c0_i32 = arith.constant 0 : i32
    %c0_i32_0 = arith.constant 0 : i32
    return %arg1, %c0_i32, %arg0 : i32, i32, i32
  }
}

</mosaic_0001>

<llo_original>
// kernel: _lambda_.3
$region0: #{_lambda_.3}
  #allocation0 [shape = 'u32[]', space=smem, size = 0x4, offset = 0x4, fixed_abs, tag = 'smem constant byte address 0x4 - core index']
  #allocation1 [shape = 'u32[144,128]{1,0:T(1,128)}', space=vmem, size = 0x12000, scoped, tag = 'internal scratch']
  %s0 = inlined_call_operand.vmem [shape: bf16[8,16,128], index: 0, kind: input, shape index: {}]
  %s1 = inlined_call_operand.vmem [shape: bf16[128,256], index: 1, kind: input, shape index: {}]
  %s2 = inlined_call_operand.vmem [shape: f32[1,256], index: 2, kind: input, shape index: {}]
  %s3 = inlined_call_operand.hbm [shape: f32[8,16,256], index: 3, kind: output, shape index: {}]
  %s4 = sld [smem:[#allocation0]]
  $region86: #{_lambda_.3} parent=0
    _
  %s6 = ssub.s32 1, %s4
  %s7 = scalar_select 0, %s6, %s4
  $region1: #{_lambda_.3} parent=0
    #allocation2 [shape = 'u8[65536]{0}', space=vmem, size = 0x10000, scoped, tag = 'input window, operand 1']
    #allocation3 [shape = 'u8[16384]{0}', space=vmem, size = 0x4000, scoped, tag = 'output window, operand 0']
    #allocation4 [shape = 's32[2]{0}', space=sflag, size = 0x8, scoped, tag = 'scoped memory for _lambda_.3']
    %8 = vsyncpa [#allocation4], 0
    %s9 = scalar_lea.sflag [#allocation4], 1
    %10 = vsyncpa %s9, 0
    loop: start=0, step=1, limit=18
    $region2: #{_lambda_.3} parent=1 // loop_pre_header
      _
    $region3: #{_lambda_.3} parent=1 // loop_header
      %s12 = sphi 0, %s16
      %p13 = scmp.ge.s32.totalorder %s12, 18
      %s19 = sphi 0, %s31
      %s20 = sphi 0, %s27
      %s21 = sphi 0, %s19
      %s22 = sphi 0, %s20
      %s23 = sphi 0, %s21
      %s24 = sphi 0, %s22
      %s34 = sphi 0, %s36
      %s37 = sphi 0, %s34
      %s38 = sphi 0, %s37
      %s54 = sphi 0, %s38
      %s60 = sphi 0, %s62
      %s63 = sphi 0, %s60
      %s64 = sphi 0, %s63
      %s80 = sphi 0, %s64
      %s86 = sphi 0, %s88
      %s89 = sphi 0, %s86
      %s90 = sphi 0, %s89
      %s106 = sphi 0, %s90
      %s114 = sphi 0, %s116
      %s117 = sphi 0, %s114
      %s118 = sphi 0, %s117
      %s134 = sphi 0, %s118
    $region4: #{_lambda_.3} parent=1 // loop_header_branch
      %15 = sbr.rel (%p13) target = $region8
    $region5: #{_lambda_.3} parent=1 // loop_body
      %s17 = ssub.s32 %s12, 1
      %s18 = ssub.s32 %s12, 2
      %s25 = sadd.s32 1, %s20
      %p26 = scmp.ge.s32.totalorder %s25, 8
      %s27 = scalar_select %p26, 0, %s25
      %s28 = sadd.s32 1, %s19
      %s29 = scalar_select %p26, %s28, %s19
      %p30 = scmp.ge.s32.totalorder %s29, 2
      %s31 = scalar_select %p30, 0, %s29
      %s32 = ssub.s32 %s20, %s27
      %p33 = scmp.eq.s32.totalorder %s32, 0
      %s35 = sadd.s32 %s34, 1
      %s36 = scalar_select %p33, %s34, %s35
      %p39 = pneg %p33
      %p40 = scmp.eq.s32.totalorder %s12, 15
      %p41 = por %p39, %p40
      %p42 = scmp.ne.s32.totalorder %s34, %s37
      %p43 = scmp.eq.s32.totalorder %s12, 0
      %p44 = por %p42, %p43
      %p45 = scmp.ne.s32.totalorder %s34, %s37
      %p46 = scmp.eq.s32.totalorder %s17, 15
      %p47 = por %p45, %p46
      %p48 = scmp.ne.s32.totalorder %s37, %s38
      %p49 = scmp.eq.s32.totalorder %s17, 0
      %p50 = por %p48, %p49
      %p51 = scmp.ne.s32.totalorder %s37, %s38
      %p52 = scmp.eq.s32.totalorder %s18, 15
      %p53 = por %p51, %p52
      %p55 = scmp.ne.s32.totalorder %s38, %s54
      %p56 = scmp.eq.s32.totalorder %s18, 0
      %p57 = por %p55, %p56
      %s58 = ssub.s32 %s19, %s31
      %p59 = scmp.eq.s32.totalorder %s58, 0
      %s61 = sadd.s32 %s60, 1
      %s62 = scalar_select %p59, %s60, %s61
      %p65 = pneg %p59
      %p66 = scmp.eq.s32.totalorder %s12, 15
      %p67 = por %p65, %p66
      %p68 = scmp.ne.s32.totalorder %s60, %s63
      %p69 = scmp.eq.s32.totalorder %s12, 0
      %p70 = por %p68, %p69
      %p71 = scmp.ne.s32.totalorder %s60, %s63
      %p72 = scmp.eq.s32.totalorder %s17, 15
      %p73 = por %p71, %p72
      %p74 = scmp.ne.s32.totalorder %s63, %s64
      %p75 = scmp.eq.s32.totalorder %s17, 0
      %p76 = por %p74, %p75
      %p77 = scmp.ne.s32.totalorder %s63, %s64
      %p78 = scmp.eq.s32.totalorder %s18, 15
      %p79 = por %p77, %p78
      %p81 = scmp.ne.s32.totalorder %s64, %s80
      %p82 = scmp.eq.s32.totalorder %s18, 0
      %p83 = por %p81, %p82
      %s84 = ssub.s32 %s19, %s31
      %p85 = scmp.eq.s32.totalorder %s84, 0
      %s87 = sadd.s32 %s86, 1
      %s88 = scalar_select %p85, %s86, %s87
      %p91 = pneg %p85
      %p92 = scmp.eq.s32.totalorder %s12, 15
      %p93 = por %p91, %p92
      %p94 = scmp.ne.s32.totalorder %s86, %s89
      %p95 = scmp.eq.s32.totalorder %s12, 0
      %p96 = por %p94, %p95
      %p97 = scmp.ne.s32.totalorder %s86, %s89
      %p98 = scmp.eq.s32.totalorder %s17, 15
      %p99 = por %p97, %p98
      %p100 = scmp.ne.s32.totalorder %s89, %s90
      %p101 = scmp.eq.s32.totalorder %s17, 0
      %p102 = por %p100, %p101
      %p103 = scmp.ne.s32.totalorder %s89, %s90
      %p104 = scmp.eq.s32.totalorder %s18, 15
      %p105 = por %p103, %p104
      %p107 = scmp.ne.s32.totalorder %s90, %s106
      %p108 = scmp.eq.s32.totalorder %s18, 0
      %p109 = por %p107, %p108
      %s110 = ssub.s32 %s20, %s27
      %s111 = ssub.s32 %s19, %s31
      %s112 = sor.u32 %s110, %s111
      %p113 = scmp.eq.s32.totalorder %s112, 0
      %s115 = sadd.s32 %s114, 1
      %s116 = scalar_select %p113, %s114, %s115
      %p119 = pneg %p113
      %p120 = scmp.eq.s32.totalorder %s12, 15
      %p121 = por %p119, %p120
      %p122 = scmp.ne.s32.totalorder %s114, %s117
      %p123 = scmp.eq.s32.totalorder %s12, 0
      %p124 = por %p122, %p123
      %p125 = scmp.ne.s32.totalorder %s114, %s117
      %p126 = scmp.eq.s32.totalorder %s17, 15
      %p127 = por %p125, %p126
      %p128 = scmp.ne.s32.totalorder %s117, %s118
      %p129 = scmp.eq.s32.totalorder %s17, 0
      %p130 = por %p128, %p129
      %p131 = scmp.ne.s32.totalorder %s117, %s118
      %p132 = scmp.eq.s32.totalorder %s18, 15
      %p133 = por %p131, %p132
      %p135 = scmp.ne.s32.totalorder %s118, %s134
      %p136 = scmp.eq.s32.totalorder %s18, 0
      %p137 = por %p135, %p136
      %p138 = scmp.le.s32.totalorder 1, %s12
      %p139 = scmp.lt.s32.totalorder %s12, 17
      %p140 = pnand %p138, %p139
      %p141 = pneg %p140
      // Predicated region
      $region9: #{_lambda_.3} parent=5 // pred_check
        _
      $region10: #{_lambda_.3} parent=5 // pred_check_branch
        %143 = sbr.rel (%p140) target = $region12
      $region11: #{_lambda_.3} parent=5 // pred_region
        %s144 = ssub.s32 %s12, 1
      $region12: #{_lambda_.3} parent=5 // pred_fallthru
        _
      %p145 = scmp.lt.s32.totalorder %s12, 16
      // Predicated region
      $region13: #{_lambda_.3} parent=5 // pred_check
        %p146 = pneg %p145
      $region14: #{_lambda_.3} parent=5 // pred_check_branch
        %148 = sbr.rel (%p146) target = $region16
      $region15: #{_lambda_.3} parent=5 // pred_region
        // Predicated region
        $region17: #{_lambda_.3} parent=15 // pred_check
          %p149 = pneg %p44
        $region18: #{_lambda_.3} parent=15 // pred_check_branch
          %151 = sbr.rel (%p149) target = $region20
        $region19: #{_lambda_.3} parent=15 // pred_region
          %p152 = scmp.lt.s32.totalorder %s20, 7
          %s153 = scalar_select %p152, %s20, 7
          %s154 = smul.addr %s153, 2
          %s155 = smul.addr %s154, 4
          %s156 = scalar_lea.vmem %s0, %s155
        $region20: #{_lambda_.3} parent=15 // pred_fallthru
          _
        // Predicated region
        $region21: #{_lambda_.3} parent=15 // pred_check
          %p157 = pneg %p70
        $region22: #{_lambda_.3} parent=15 // pred_check_branch
          %159 = sbr.rel (%p157) target = $region24
        $region23: #{_lambda_.3} parent=15 // pred_region
          %s160 = sand.u32 %s60, 1
          %s161 = sand.u32 %s60, 1
          %s162 = smul.addr %s161, 64
          %s163 = scalar_lea.vmem [#allocation2], %s162
          %s164 = smul.addr %s19, 4
          %s165 = scalar_lea.vmem %s1, %s164
          // Predicated region
          $region25: #{_lambda_.3} parent=23 // pred_check
            _
          $region26: #{_lambda_.3} parent=23 // pred_check_branch
            %167 = sbr.rel (0) target = $region28
          $region27: #{_lambda_.3} parent=23 // pred_region
            // Predicated region
            $region29: #{_lambda_.3} parent=27 // pred_check
              _
            $region30: #{_lambda_.3} parent=27 // pred_check_branch
              %169 = sbr.rel target = $region32
            $region31: #{_lambda_.3} parent=27 // pred_region
              // Predicated region
              $region44: #{_lambda_.3} parent=31 // pred_check
                _
              $region45: #{_lambda_.3} parent=31 // pred_check_branch
                %214 = sbr.rel (0) target = $region47
              $region46: #{_lambda_.3} parent=31 // pred_region
                loop: start=0, step=1, limit=1
                $region48: #{_lambda_.3} parent=46 // loop_pre_header
                  _
                $region49: #{_lambda_.3} parent=46 // loop_header
                  %s216 = sphi 0, %s220
                  %p217 = scmp.ge.s32.totalorder %s216, 1
                  %s221 = sphi %s165, %s165
                  %s222 = sphi %s163, %s163
                $region50: #{_lambda_.3} parent=46 // loop_header_branch
                  %219 = sbr.rel (%p217) target = $region54
                $region51: #{_lambda_.3} parent=46 // loop_body
                  _
                $region52: #{_lambda_.3} parent=46 // loop_footer
                  %s220 = sadd.s32 1, %s216
                $region53: #{_lambda_.3} parent=46 // loop_footer_branch
                  %215 = sbr.rel target = $region49
                $region54: #{_lambda_.3} parent=46 // loop_exit
                  _
                loop: start=0, step=1, limit=1
                $region55: #{_lambda_.3} parent=46 // loop_pre_header
                  _
                $region56: #{_lambda_.3} parent=46 // loop_header
                  %s225 = sphi 0, %s229
                  %p226 = scmp.ge.s32.totalorder %s225, 1
                  %s230 = sphi %s165, %s165
                  %s231 = sphi %s163, %s163
                $region57: #{_lambda_.3} parent=46 // loop_header_branch
                  %228 = sbr.rel (%p226) target = $region61
                $region58: #{_lambda_.3} parent=46 // loop_body
                  %v232 = vld [vmem:[%s230] sm:$0xf]
                  %233 = vst [vmem:[%s231] sm:$0xf] %v232
                  %v234 = vld [vmem:[%s230 + $0x8] sm:$0xf]
                  %235 = vst [vmem:[%s231 + $0x4] sm:$0xf] %v234
                  %v236 = vld [vmem:[%s230 + $0x10] sm:$0xf]
                  %237 = vst [vmem:[%s231 + $0x8] sm:$0xf] %v236
                  %v238 = vld [vmem:[%s230 + $0x18] sm:$0xf]
                  %239 = vst [vmem:[%s231 + $0xc] sm:$0xf] %v238
                  %v240 = vld [vmem:[%s230 + $0x20] sm:$0xf]
                  %241 = vst [vmem:[%s231 + $0x10] sm:$0xf] %v240
                  %v242 = vld [vmem:[%s230 + $0x28] sm:$0xf]
                  %243 = vst [vmem:[%s231 + $0x14] sm:$0xf] %v242
                  %v244 = vld [vmem:[%s230 + $0x30] sm:$0xf]
                  %245 = vst [vmem:[%s231 + $0x18] sm:$0xf] %v244
                  %v246 = vld [vmem:[%s230 + $0x38] sm:$0xf]
                  %247 = vst [vmem:[%s231 + $0x1c] sm:$0xf] %v246
                  %v248 = vld [vmem:[%s230 + $0x40] sm:$0xf]
                  %249 = vst [vmem:[%s231 + $0x20] sm:$0xf] %v248
                  %v250 = vld [vmem:[%s230 + $0x48] sm:$0xf]
                  %251 = vst [vmem:[%s231 + $0x24] sm:$0xf] %v250
                  %v252 = vld [vmem:[%s230 + $0x50] sm:$0xf]
                  %253 = vst [vmem:[%s231 + $0x28] sm:$0xf] %v252
                  %v254 = vld [vmem:[%s230 + $0x58] sm:$0xf]
                  %255 = vst [vmem:[%s231 + $0x2c] sm:$0xf] %v254
                  %v256 = vld [vmem:[%s230 + $0x60] sm:$0xf]
                  %257 = vst [vmem:[%s231 + $0x30] sm:$0xf] %v256
                  %v258 = vld [vmem:[%s230 + $0x68] sm:$0xf]
                  %259 = vst [vmem:[%s231 + $0x34] sm:$0xf] %v258
                  %v260 = vld [vmem:[%s230 + $0x70] sm:$0xf]
                  %261 = vst [vmem:[%s231 + $0x38] sm:$0xf] %v260
                  %v262 = vld [vmem:[%s230 + $0x78] sm:$0xf]
                  %263 = vst [vmem:[%s231 + $0x3c] sm:$0xf] %v262
                $region59: #{_lambda_.3} parent=46 // loop_footer
                  %s229 = sadd.s32 1, %s225
                $region60: #{_lambda_.3} parent=46 // loop_footer_branch
                  %224 = sbr.rel target = $region56
                $region61: #{_lambda_.3} parent=46 // loop_exit
                  _
              $region47: #{_lambda_.3} parent=31 // pred_fallthru
                _
            $region32: #{_lambda_.3} parent=27 // pred_fallthru
              _
            // Predicated region
            $region33: #{_lambda_.3} parent=27 // pred_check
              _
            $region34: #{_lambda_.3} parent=27 // pred_check_branch
              %171 = sbr.rel (0) target = $region36
            $region35: #{_lambda_.3} parent=27 // pred_region
              loop: start=0, step=1, limit=1
              $region37: #{_lambda_.3} parent=35 // loop_pre_header
                _
              $region38: #{_lambda_.3} parent=35 // loop_header
                %s174 = sphi 0, %s178
                %p175 = scmp.ge.s32.totalorder %s174, 1
                %s179 = sphi %s165, %s165
                %s180 = sphi %s163, %s163
              $region39: #{_lambda_.3} parent=35 // loop_header_branch
                %177 = sbr.rel (%p175) target = $region43
              $region40: #{_lambda_.3} parent=35 // loop_body
                %v181 = vld [vmem:[%s179] sm:$0xf]
                %182 = vst [vmem:[%s180] sm:$0xf] %v181
                %v183 = vld [vmem:[%s179 + $0x8] sm:$0xf]
                %184 = vst [vmem:[%s180 + $0x4] sm:$0xf] %v183
                %v185 = vld [vmem:[%s179 + $0x10] sm:$0xf]
                %186 = vst [vmem:[%s180 + $0x8] sm:$0xf] %v185
                %v187 = vld [vmem:[%s179 + $0x18] sm:$0xf]
                %188 = vst [vmem:[%s180 + $0xc] sm:$0xf] %v187
                %v189 = vld [vmem:[%s179 + $0x20] sm:$0xf]
                %190 = vst [vmem:[%s180 + $0x10] sm:$0xf] %v189
                %v191 = vld [vmem:[%s179 + $0x28] sm:$0xf]
                %192 = vst [vmem:[%s180 + $0x14] sm:$0xf] %v191
                %v193 = vld [vmem:[%s179 + $0x30] sm:$0xf]
                %194 = vst [vmem:[%s180 + $0x18] sm:$0xf] %v193
                %v195 = vld [vmem:[%s179 + $0x38] sm:$0xf]
                %196 = vst [vmem:[%s180 + $0x1c] sm:$0xf] %v195
                %v197 = vld [vmem:[%s179 + $0x40] sm:$0xf]
                %198 = vst [vmem:[%s180 + $0x20] sm:$0xf] %v197
                %v199 = vld [vmem:[%s179 + $0x48] sm:$0xf]
                %200 = vst [vmem:[%s180 + $0x24] sm:$0xf] %v199
                %v201 = vld [vmem:[%s179 + $0x50] sm:$0xf]
                %202 = vst [vmem:[%s180 + $0x28] sm:$0xf] %v201
                %v203 = vld [vmem:[%s179 + $0x58] sm:$0xf]
                %204 = vst [vmem:[%s180 + $0x2c] sm:$0xf] %v203
                %v205 = vld [vmem:[%s179 + $0x60] sm:$0xf]
                %206 = vst [vmem:[%s180 + $0x30] sm:$0xf] %v205
                %v207 = vld [vmem:[%s179 + $0x68] sm:$0xf]
                %208 = vst [vmem:[%s180 + $0x34] sm:$0xf] %v207
                %v209 = vld [vmem:[%s179 + $0x70] sm:$0xf]
                %210 = vst [vmem:[%s180 + $0x38] sm:$0xf] %v209
                %v211 = vld [vmem:[%s179 + $0x78] sm:$0xf]
                %212 = vst [vmem:[%s180 + $0x3c] sm:$0xf] %v211
              $region41: #{_lambda_.3} parent=35 // loop_footer
                %s178 = sadd.s32 1, %s174
              $region42: #{_lambda_.3} parent=35 // loop_footer_branch
                %173 = sbr.rel target = $region38
              $region43: #{_lambda_.3} parent=35 // loop_exit
                _
            $region36: #{_lambda_.3} parent=27 // pred_fallthru
              _
          $region28: #{_lambda_.3} parent=23 // pred_fallthru
            _
          %264 = vnop
        $region24: #{_lambda_.3} parent=15 // pred_fallthru
          _
        // Predicated region
        $region62: #{_lambda_.3} parent=15 // pred_check
          %p265 = pneg %p96
        $region63: #{_lambda_.3} parent=15 // pred_check_branch
          %267 = sbr.rel (%p265) target = $region65
        $region64: #{_lambda_.3} parent=15 // pred_region
          %p268 = scmp.lt.s32.totalorder %s19, 1
          %s269 = scalar_select %p268, %s19, 1
          %s270 = scalar_lea.vmem %s2, %s269
        $region65: #{_lambda_.3} parent=15 // pred_fallthru
          _
      $region16: #{_lambda_.3} parent=5 // pred_fallthru
        _
      %p271 = scmp.le.s32.totalorder 1, %s12
      %p272 = scmp.lt.s32.totalorder %s12, 17
      %p273 = pnand %p271, %p272
      %p274 = pneg %p273
      // Predicated region
      $region66: #{_lambda_.3} parent=5 // pred_check
        _
      $region67: #{_lambda_.3} parent=5 // pred_check_branch
        %276 = sbr.rel (%p273) target = $region69
      $region68: #{_lambda_.3} parent=5 // pred_region
        %s277 = ssub.s32 %s12, 1
        %s278 = sand.u32 %s63, 1
        %s279 = sand.u32 %s63, 1
        %s280 = smul.addr %s279, 64
        %s281 = scalar_lea.vmem [#allocation2], %s280
        // Predicated region
        $region70: #{_lambda_.3} parent=68 // pred_check
          %p282 = pneg %p76
        $region71: #{_lambda_.3} parent=68 // pred_check_branch
          %284 = sbr.rel (%p282) target = $region73
        $region72: #{_lambda_.3} parent=68 // pred_region
          _
        $region73: #{_lambda_.3} parent=68 // pred_fallthru
          _
        %p285 = scmp.lt.s32.totalorder %s22, 7
        %s286 = scalar_select %p285, %s22, 7
        %s287 = smul.addr %s286, 2
        %s288 = smul.addr %s287, 4
        %s289 = scalar_lea.vmem %s0, %s288
        %p290 = pneg %p50
        %p291 = pneg %p47
        %s292 = sand.u32 %s63, 1
        %s293 = sand.u32 %s63, 1
        %s294 = smul.addr %s293, 64
        %s295 = scalar_lea.vmem [#allocation2], %s294
        %p296 = pneg %p76
        %p297 = pneg %p73
        %p298 = scmp.lt.s32.totalorder %s21, 1
        %s299 = scalar_select %p298, %s21, 1
        %s300 = scalar_lea.vmem %s2, %s299
        %p301 = pneg %p102
        %p302 = pneg %p99
        %p303 = pneg %p130
        %p304 = pneg %p127
        %s305 = sand.u32 %s117, 1
        %s306 = scalar_lea.sflag [#allocation4], %s305
        %s307 = sand.u32 %s117, 1
        %s308 = smul.addr %s307, 16
        %s309 = scalar_lea.vmem [#allocation3], %s308
        %p310 = scmp.lt.s32.totalorder %s22, 7
        %s311 = scalar_select %p310, %s22, 7
        %s312 = smul.addr %s311, 2
        %s313 = smul.addr %s312, 4
        %s314 = scalar_lea.vmem %s0, %s313
        %p315 = scmp.lt.s32.totalorder %s21, 1
        %s316 = scalar_select %p315, %s21, 1
        %s317 = scalar_lea.vmem %s2, %s316
        %v319 = vld [vmem:[%s314] sm:$0xf]
        %v320 = vld [vmem:[%s314 + $0x4] sm:$0xf]
        %v321 = vld [vmem:[%s281] sm:$0xf]
        %v322 = vld [vmem:[%s281 + $0x4] sm:$0xf]
        %v323 = vld [vmem:[%s281 + $0x8] sm:$0xf]
        %v324 = vld [vmem:[%s281 + $0xc] sm:$0xf]
        %v325 = vld [vmem:[%s281 + $0x10] sm:$0xf]
        %v326 = vld [vmem:[%s281 + $0x14] sm:$0xf]
        %v327 = vld [vmem:[%s281 + $0x18] sm:$0xf]
        %v328 = vld [vmem:[%s281 + $0x1c] sm:$0xf]
        %v329 = vld [vmem:[%s281 + $0x20] sm:$0xf]
        %v330 = vld [vmem:[%s281 + $0x24] sm:$0xf]
        %v331 = vld [vmem:[%s281 + $0x28] sm:$0xf]
        %v332 = vld [vmem:[%s281 + $0x2c] sm:$0xf]
        %v333 = vld [vmem:[%s281 + $0x30] sm:$0xf]
        %v334 = vld [vmem:[%s281 + $0x34] sm:$0xf]
        %v335 = vld [vmem:[%s281 + $0x38] sm:$0xf]
        %v336 = vld [vmem:[%s281 + $0x3c] sm:$0xf]
        %v337 = vld [vmem:[%s317] sm:$0x1]
        %v339 = vlaneseq
        %v340 = vshrl.u32 %v339, 7
        %v341 = vsub.s32 0, %v340
        %v342 = vrot.slane %v337, %v341
        %v346 = vunpack.c.l.b16 %v319
        %v347 = vunpack.c.l.b16 %v320
        %v348 = vpack.c.b16 %v347, %v346
        %v366 = vunpack.c.l.b16 %v321
        %v367 = vunpack.c.l.b16 %v322
        %v368 = vunpack.c.l.b16 %v323
        %v369 = vunpack.c.l.b16 %v324
        %v370 = vunpack.c.l.b16 %v325
        %v371 = vunpack.c.l.b16 %v326
        %v372 = vunpack.c.l.b16 %v327
        %v373 = vunpack.c.l.b16 %v328
        %v374 = vunpack.c.l.b16 %v329
        %v375 = vunpack.c.l.b16 %v330
        %v376 = vunpack.c.l.b16 %v331
        %v377 = vunpack.c.l.b16 %v332
        %v378 = vunpack.c.l.b16 %v333
        %v379 = vunpack.c.l.b16 %v334
        %v380 = vunpack.c.l.b16 %v335
        %v381 = vunpack.c.l.b16 %v336
        %v382 = vpack.c.b16 %v367, %v366
        %v383 = vpack.c.b16 %v369, %v368
        %v384 = vpack.c.b16 %v371, %v370
        %v385 = vpack.c.b16 %v373, %v372
        %v386 = vpack.c.b16 %v375, %v374
        %v387 = vpack.c.b16 %v377, %v376
        %v388 = vpack.c.b16 %v379, %v378
        %v389 = vpack.c.b16 %v381, %v380
        %398 = vmatprep.subr.bf16.mxu0 0
        %399 = vmatpush1.bf16.msra.mxu0 %v382
        %400 = vmatprep.subr.bf16.mxu0 0
        %401 = vmatpush1.bf16.msra.mxu0 %v383
        %402 = vmatprep.subr.bf16.mxu0 0
        %403 = vmatpush1.bf16.msra.mxu0 %v384
        %404 = vmatprep.subr.bf16.mxu0 0
        %405 = vmatpush1.bf16.msra.mxu0 %v385
        %406 = vmatprep.subr.bf16.mxu0 0
        %407 = vmatpush1.bf16.msra.mxu0 %v386
        %408 = vmatprep.subr.bf16.mxu0 0
        %409 = vmatpush1.bf16.msra.mxu0 %v387
        %410 = vmatprep.subr.bf16.mxu0 0
        %411 = vmatpush1.bf16.msra.mxu0 %v388
        %412 = vmatprep.subr.bf16.mxu0 0
        %413 = vmatpush1.bf16.msra.mxu0 %v389
        %414 = vmatprep.subr.bf16.mxu0 0
        %415 = vmatpush1.bf16.msra.mxu0 0
        %416 = vmatprep.subr.bf16.mxu0 0
        %417 = vmatpush1.bf16.msra.mxu0 0
        %418 = vmatprep.subr.bf16.mxu0 0
        %419 = vmatpush1.bf16.msra.mxu0 0
        %420 = vmatprep.subr.bf16.mxu0 0
        %421 = vmatpush1.bf16.msra.mxu0 0
        %422 = vmatprep.subr.bf16.mxu0 0
        %423 = vmatpush1.bf16.msra.mxu0 0
        %424 = vmatprep.subr.bf16.mxu0 0
        %425 = vmatpush1.bf16.msra.mxu0 0
        %426 = vmatprep.subr.bf16.mxu0 0
        %427 = vmatpush1.bf16.msra.mxu0 0
        %428 = vmatprep.subr.bf16.mxu0 0
        %429 = vmatpush1.bf16.msra.mxu0 0
        %430 = vmatprep.mubr.bf16.mxu0 0
        %431 = vmatmul.mubr.bf16.gmra.mrb[0].mxu0 %v348
        %v432 = vpop.f32.mrb[0].mxu0
        %v433 = vadd.f32 %v342, %v432
        %v434 = vpop.f32.mrb[0].mxu0
        %v435 = vpop.f32.mrb[0].mxu0
        %v436 = vadd.f32 %v342, %v435
        %v437 = vpop.f32.mrb[0].mxu0
        %438 = vdwg.mxu0
        %439 = vst [vmem:[%s309] sm:$0xff] %v433
        %440 = vst [vmem:[%s309 + $0x8] sm:$0xff] %v436
        %s441 = sand.u32 %s117, 1
        %s442 = scalar_lea.sflag [#allocation4], %s441
        %s443 = sand.u32 %s117, 1
        %s444 = smul.addr %s443, 16
        %s445 = scalar_lea.vmem [#allocation3], %s444
        // Predicated region
        $region74: #{_lambda_.3} parent=68 // pred_check
          %p446 = pneg %p127
        $region75: #{_lambda_.3} parent=68 // pred_check_branch
          %448 = sbr.rel (%p446) target = $region77
        $region76: #{_lambda_.3} parent=68 // pred_region
          %s450 = ssub.s32 256, 256
          %451 = vsyncadd %s442, %s450
          %s452 = smul.addr %s22, 4
          %s453 = sadd.s32 %s21, %s452
          %s454 = smul.addr %s453, 128
          %s455 = scalar_lea.hbm %s3, %s454
          %s456 = sshll.u32 %s445, 4
          %s457 = int_to_ptr.vmem [resolvable:$true] %s456
          %462 = dma.vmem_to_hbm [thread:$0]  %s457, 256, %s455, %s442, 128, 256, 8
        $region77: #{_lambda_.3} parent=68 // pred_fallthru
          _
      $region69: #{_lambda_.3} parent=5 // pred_fallthru
        _
      %p463 = scmp.le.s32.totalorder 2, %s12
      // Predicated region
      $region78: #{_lambda_.3} parent=5 // pred_check
        %p464 = pneg %p463
      $region79: #{_lambda_.3} parent=5 // pred_check_branch
        %466 = sbr.rel (%p464) target = $region81
      $region80: #{_lambda_.3} parent=5 // pred_region
        %s467 = ssub.s32 %s12, 2
        // Predicated region
        $region82: #{_lambda_.3} parent=80 // pred_check
          %p468 = pneg %p133
        $region83: #{_lambda_.3} parent=80 // pred_check_branch
          %470 = sbr.rel (%p468) target = $region85
        $region84: #{_lambda_.3} parent=80 // pred_region
          %s471 = sand.u32 %s118, 1
          %s472 = scalar_lea.sflag [#allocation4], %s471
          %s473 = sand.u32 %s118, 1
          %s474 = smul.addr %s473, 16
          %s475 = scalar_lea.vmem [#allocation3], %s474
          %476 = dma.done %s472, 256
        $region85: #{_lambda_.3} parent=80 // pred_fallthru
          _
      $region81: #{_lambda_.3} parent=5 // pred_fallthru
        _
    $region6: #{_lambda_.3} parent=1 // loop_footer
      %s16 = sadd.s32 1, %s12
    $region7: #{_lambda_.3} parent=1 // loop_footer_branch
      %11 = sbr.rel target = $region3
    $region8: #{_lambda_.3} parent=1 // loop_exit
      _
    %477 = vsyncpa [#allocation4], 1
    %s478 = scalar_lea.sflag [#allocation4], 1
    %479 = vsyncpa %s478, 1

// kernel: _lambda_.2
$region0: #{_lambda_.2}
  #allocation0 [shape = 'u32[]', space=smem, size = 0x4, offset = 0x4, fixed_abs, tag = 'smem constant byte address 0x4 - core index']
  #allocation1 [shape = 'u32[144,128]{1,0:T(1,128)}', space=vmem, size = 0x12000, scoped, tag = 'internal scratch']
  #allocation2 [shape = 'f32[64,512]{1,0:T(8,128)}', space=vmem, size = 0x20000, scoped, tag = 'scratch operand']
  #allocation3 [shape = 'f32[2,8,128]{2,1,0:T(8,128)}', space=vmem, size = 0x2000, scoped, tag = 'scratch operand']
  %s0 = inlined_call_operand.vmem [shape: bf16[128,32], index: 0, kind: input, shape index: {}]
  %s1 = inlined_call_operand.vmem [shape: bf16[32,512], index: 1, kind: input, shape index: {}]
  %s2 = inlined_call_operand.vmem [shape: bf16[128,512], index: 2, kind: input, shape index: {}]
  %s3 = inlined_call_operand.vmem [shape: f32[1,512], index: 3, kind: input, shape index: {}]
  %s4 = inlined_call_operand.vmem [shape: bf16[128,128], index: 4, kind: output, shape index: {}]
  %s5 = sld [smem:[#allocation0]]
  $region53: #{_lambda_.2} parent=0
    _
  %s7 = ssub.s32 1, %s5
  %s8 = scalar_select 0, %s7, %s5
  loop: start=0, step=1, limit=4
  $region2: #{_lambda_.2} parent=0 // loop_pre_header
    _
  $region3: #{_lambda_.2} parent=0 // loop_header
    %s10 = sphi 0, %s14
    %p11 = scmp.ge.s32.totalorder %s10, 4
    %s20 = sphi 0, %s22
    %s23 = sphi 0, %s20
    %s24 = sphi 0, %s23
    %s40 = sphi 0, %s24
    %s44 = sphi 0, %s44
    %s46 = sphi 0, %s44
    %s47 = sphi 0, %s46
    %s61 = sphi 0, %s47
    %s65 = sphi 0, %s65
    %s67 = sphi 0, %s65
    %s68 = sphi 0, %s67
    %s82 = sphi 0, %s68
    %s86 = sphi 0, %s86
    %s88 = sphi 0, %s86
    %s89 = sphi 0, %s88
    %s103 = sphi 0, %s89
    %s109 = sphi 0, %s111
    %s112 = sphi 0, %s109
    %s113 = sphi 0, %s112
    %s129 = sphi 0, %s113
  $region4: #{_lambda_.2} parent=0 // loop_header_branch
    %13 = sbr.rel (%p11) target = $region8
  $region5: #{_lambda_.2} parent=0 // loop_body
    %s15 = ssub.s32 %s10, 1
    %s16 = ssub.s32 %s10, 2
    %s17 = sadd.s32 %s10, 1
    %s18 = ssub.s32 %s10, %s17
    %p19 = scmp.eq.s32.totalorder %s18, 0
    %s21 = sadd.s32 %s20, 1
    %s22 = scalar_select %p19, %s20, %s21
    %p25 = pneg %p19
    %p26 = scmp.eq.s32.totalorder %s10, 1
    %p27 = por %p25, %p26
    %p28 = scmp.ne.s32.totalorder %s20, %s23
    %p29 = scmp.eq.s32.totalorder %s10, 0
    %p30 = por %p28, %p29
    %p31 = scmp.ne.s32.totalorder %s20, %s23
    %p32 = scmp.eq.s32.totalorder %s15, 1
    %p33 = por %p31, %p32
    %p34 = scmp.ne.s32.totalorder %s23, %s24
    %p35 = scmp.eq.s32.totalorder %s15, 0
    %p36 = por %p34, %p35
    %p37 = scmp.ne.s32.totalorder %s23, %s24
    %p38 = scmp.eq.s32.totalorder %s16, 1
    %p39 = por %p37, %p38
    %p41 = scmp.ne.s32.totalorder %s24, %s40
    %p42 = scmp.eq.s32.totalorder %s16, 0
    %p43 = por %p41, %p42
    %s45 = sadd.s32 %s44, 1
    %p48 = scmp.eq.s32.totalorder %s10, 1
    %p49 = scmp.ne.s32.totalorder %s44, %s46
    %p50 = scmp.eq.s32.totalorder %s10, 0
    %p51 = por %p49, %p50
    %p52 = scmp.ne.s32.totalorder %s44, %s46
    %p53 = scmp.eq.s32.totalorder %s15, 1
    %p54 = por %p52, %p53
    %p55 = scmp.ne.s32.totalorder %s46, %s47
    %p56 = scmp.eq.s32.totalorder %s15, 0
    %p57 = por %p55, %p56
    %p58 = scmp.ne.s32.totalorder %s46, %s47
    %p59 = scmp.eq.s32.totalorder %s16, 1
    %p60 = por %p58, %p59
    %p62 = scmp.ne.s32.totalorder %s47, %s61
    %p63 = scmp.eq.s32.totalorder %s16, 0
    %p64 = por %p62, %p63
    %s66 = sadd.s32 %s65, 1
    %p69 = scmp.eq.s32.totalorder %s10, 1
    %p70 = scmp.ne.s32.totalorder %s65, %s67
    %p71 = scmp.eq.s32.totalorder %s10, 0
    %p72 = por %p70, %p71
    %p73 = scmp.ne.s32.totalorder %s65, %s67
    %p74 = scmp.eq.s32.totalorder %s15, 1
    %p75 = por %p73, %p74
    %p76 = scmp.ne.s32.totalorder %s67, %s68
    %p77 = scmp.eq.s32.totalorder %s15, 0
    %p78 = por %p76, %p77
    %p79 = scmp.ne.s32.totalorder %s67, %s68
    %p80 = scmp.eq.s32.totalorder %s16, 1
    %p81 = por %p79, %p80
    %p83 = scmp.ne.s32.totalorder %s68, %s82
    %p84 = scmp.eq.s32.totalorder %s16, 0
    %p85 = por %p83, %p84
    %s87 = sadd.s32 %s86, 1
    %p90 = scmp.eq.s32.totalorder %s10, 1
    %p91 = scmp.ne.s32.totalorder %s86, %s88
    %p92 = scmp.eq.s32.totalorder %s10, 0
    %p93 = por %p91, %p92
    %p94 = scmp.ne.s32.totalorder %s86, %s88
    %p95 = scmp.eq.s32.totalorder %s15, 1
    %p96 = por %p94, %p95
    %p97 = scmp.ne.s32.totalorder %s88, %s89
    %p98 = scmp.eq.s32.totalorder %s15, 0
    %p99 = por %p97, %p98
    %p100 = scmp.ne.s32.totalorder %s88, %s89
    %p101 = scmp.eq.s32.totalorder %s16, 1
    %p102 = por %p100, %p101
    %p104 = scmp.ne.s32.totalorder %s89, %s103
    %p105 = scmp.eq.s32.totalorder %s16, 0
    %p106 = por %p104, %p105
    %s107 = ssub.s32 %s10, %s17
    %p108 = scmp.eq.s32.totalorder %s107, 0
    %s110 = sadd.s32 %s109, 1
    %s111 = scalar_select %p108, %s109, %s110
    %p114 = pneg %p108
    %p115 = scmp.eq.s32.totalorder %s10, 1
    %p116 = por %p114, %p115
    %p117 = scmp.ne.s32.totalorder %s109, %s112
    %p118 = scmp.eq.s32.totalorder %s10, 0
    %p119 = por %p117, %p118
    %p120 = scmp.ne.s32.totalorder %s109, %s112
    %p121 = scmp.eq.s32.totalorder %s15, 1
    %p122 = por %p120, %p121
    %p123 = scmp.ne.s32.totalorder %s112, %s113
    %p124 = scmp.eq.s32.totalorder %s15, 0
    %p125 = por %p123, %p124
    %p126 = scmp.ne.s32.totalorder %s112, %s113
    %p127 = scmp.eq.s32.totalorder %s16, 1
    %p128 = por %p126, %p127
    %p130 = scmp.ne.s32.totalorder %s113, %s129
    %p131 = scmp.eq.s32.totalorder %s16, 0
    %p132 = por %p130, %p131
    %p133 = scmp.le.s32.totalorder 1, %s10
    %p134 = scmp.lt.s32.totalorder %s10, 3
    %p135 = pnand %p133, %p134
    %p136 = pneg %p135
    // Predicated region
    $region9: #{_lambda_.2} parent=5 // pred_check
      _
    $region10: #{_lambda_.2} parent=5 // pred_check_branch
      %138 = sbr.rel (%p135) target = $region12
    $region11: #{_lambda_.2} parent=5 // pred_region
      %s139 = ssub.s32 %s10, 1
      // Predicated region
      $region13: #{_lambda_.2} parent=11 // pred_check
        %p140 = pneg %p57
      $region14: #{_lambda_.2} parent=11 // pred_check_branch
        %142 = sbr.rel (%p140) target = $region16
      $region15: #{_lambda_.2} parent=11 // pred_region
        _
      $region16: #{_lambda_.2} parent=11 // pred_fallthru
        _
      // Predicated region
      $region17: #{_lambda_.2} parent=11 // pred_check
        %p143 = pneg %p78
      $region18: #{_lambda_.2} parent=11 // pred_check_branch
        %145 = sbr.rel (%p143) target = $region20
      $region19: #{_lambda_.2} parent=11 // pred_region
        _
      $region20: #{_lambda_.2} parent=11 // pred_fallthru
        _
      // Predicated region
      $region21: #{_lambda_.2} parent=11 // pred_check
        %p146 = pneg %p99
      $region22: #{_lambda_.2} parent=11 // pred_check_branch
        %148 = sbr.rel (%p146) target = $region24
      $region23: #{_lambda_.2} parent=11 // pred_region
        _
      $region24: #{_lambda_.2} parent=11 // pred_fallthru
        _
    $region12: #{_lambda_.2} parent=5 // pred_fallthru
      _
    %p149 = scmp.lt.s32.totalorder %s10, 2
    // Predicated region
    $region25: #{_lambda_.2} parent=5 // pred_check
      %p150 = pneg %p149
    $region26: #{_lambda_.2} parent=5 // pred_check_branch
      %152 = sbr.rel (%p150) target = $region28
    $region27: #{_lambda_.2} parent=5 // pred_region
      // Predicated region
      $region29: #{_lambda_.2} parent=27 // pred_check
        %p153 = pneg %p30
      $region30: #{_lambda_.2} parent=27 // pred_check_branch
        %155 = sbr.rel (%p153) target = $region32
      $region31: #{_lambda_.2} parent=27 // pred_region
        %s156 = smul.u32 8, %s10
        %p157 = scmp.lt.s32.totalorder %s156, 15
        %s158 = scalar_select %p157, %s156, 15
        %s159 = smul.addr %s158, 4
        %s160 = scalar_lea.vmem %s0, %s159
        %s161 = smul.u32 8, %s10
      $region32: #{_lambda_.2} parent=27 // pred_fallthru
        _
    $region28: #{_lambda_.2} parent=5 // pred_fallthru
      _
    %p162 = scmp.le.s32.totalorder 1, %s10
    %p163 = scmp.lt.s32.totalorder %s10, 3
    %p164 = pnand %p162, %p163
    %p165 = pneg %p164
    // Predicated region
    $region33: #{_lambda_.2} parent=5 // pred_check
      _
    $region34: #{_lambda_.2} parent=5 // pred_check_branch
      %167 = sbr.rel (%p164) target = $region36
    $region35: #{_lambda_.2} parent=5 // pred_region
      %s168 = ssub.s32 %s10, 1
      %s169 = smul.u32 8, %s15
      %p170 = scmp.lt.s32.totalorder %s169, 15
      %s171 = scalar_select %p170, %s169, 15
      %s172 = smul.addr %s171, 4
      %s173 = scalar_lea.vmem %s0, %s172
      %p174 = pneg %p36
      %p175 = pneg %p33
      %p176 = pneg %p57
      %p177 = pneg %p54
      %p178 = pneg %p78
      %p179 = pneg %p75
      %p180 = pneg %p99
      %p181 = pneg %p96
      %p182 = pneg %p125
      %p183 = pneg %p122
      %s184 = smul.u32 8, %s15
      %p185 = scmp.lt.s32.totalorder %s184, 15
      %s186 = scalar_select %p185, %s184, 15
      %s187 = smul.addr %s186, 4
      %s188 = scalar_lea.vmem %s4, %s187
      %s189 = smul.u32 8, %s15
      %p190 = scmp.lt.s32.totalorder %s189, 15
      %s191 = scalar_select %p190, %s189, 15
      %s192 = smul.addr %s191, 4
      %s193 = scalar_lea.vmem %s0, %s192
      %s194 = smul.u32 8, %s15
      %s195 = smul.u32 8, %s15
      %p196 = scmp.lt.s32.totalorder %s195, 15
      %s197 = scalar_select %p196, %s195, 15
      %s198 = smul.addr %s197, 4
      %s199 = scalar_lea.vmem %s4, %s198
      %s200 = smul.u32 8, %s15
      %p202 = scmp.eq.s32.totalorder %s15, 0
      // Predicated region
      $region37: #{_lambda_.2} parent=35 // pred_check
        %p203 = pneg %p202
      $region38: #{_lambda_.2} parent=35 // pred_check_branch
        %205 = sbr.rel (%p203) target = $region40
      $region39: #{_lambda_.2} parent=35 // pred_region
        %206 = vst [vmem:[#allocation3] sm:$0xff] 0.0
        %207 = vst [vmem:[#allocation3 + $0x8] sm:$0xff] 0.0
      $region40: #{_lambda_.2} parent=35 // pred_fallthru
        _
      %v208 = vld [vmem:[%s193] sm:$0xf]
      %v209 = vld [vmem:[%s193 + $0x4] sm:$0xf]
      %v210 = vld [vmem:[%s193 + $0x8] sm:$0xf]
      %v211 = vld [vmem:[%s193 + $0xc] sm:$0xf]
      %v212 = vld [vmem:[%s193 + $0x10] sm:$0xf]
      %v213 = vld [vmem:[%s193 + $0x14] sm:$0xf]
      %v214 = vld [vmem:[%s193 + $0x18] sm:$0xf]
      %v215 = vld [vmem:[%s193 + $0x1c] sm:$0xf]
      %v216 = vld [vmem:[%s1] sm:$0xff]
      %v217 = vld [vmem:[%s1 + $0x8] sm:$0xff]
      %v218 = vld [vmem:[%s1 + $0x10] sm:$0xff]
      %v219 = vld [vmem:[%s1 + $0x18] sm:$0xff]
      %v220 = vld [vmem:[%s1 + $0x20] sm:$0xff]
      %v221 = vld [vmem:[%s1 + $0x28] sm:$0xff]
      %v222 = vld [vmem:[%s1 + $0x30] sm:$0xff]
      %v223 = vld [vmem:[%s1 + $0x38] sm:$0xff]
      %v224 = vld [vmem:[%s3] sm:$0xf]
      %v226 = vlaneseq
      %v227 = vshrl.u32 %v226, 7
      %v228 = vsub.s32 0, %v227
      %v229 = vrot.slane %v224, %v228
      %v230 = vlaneseq
      %v231 = vshrl.u32 %v230, 7
      %v232 = vsub.s32 1, %v231
      %v233 = vrot.slane %v224, %v232
      %v234 = vlaneseq
      %v235 = vshrl.u32 %v234, 7
      %v236 = vsub.s32 2, %v235
      %v237 = vrot.slane %v224, %v236
      %v238 = vlaneseq
      %v239 = vshrl.u32 %v238, 7
      %v240 = vsub.s32 3, %v239
      %v241 = vrot.slane %v224, %v240
      %v254 = vunpack.c.l.b16 %v208
      %v255 = vunpack.c.l.b16 %v209
      %v256 = vunpack.c.l.b16 %v210
      %v257 = vunpack.c.l.b16 %v211
      %v258 = vunpack.c.l.b16 %v212
      %v259 = vunpack.c.l.b16 %v213
      %v260 = vunpack.c.l.b16 %v214
      %v261 = vunpack.c.l.b16 %v215
      %v262 = vpack.c.b16 %v255, %v254
      %v263 = vpack.c.b16 %v257, %v256
      %v264 = vpack.c.b16 %v259, %v258
      %v265 = vpack.c.b16 %v261, %v260
      %v274 = vunpack.c.l.b16 %v216
      %v275 = vunpack.c.h.b16 %v216
      %v276 = vunpack.c.l.b16 %v217
      %v277 = vunpack.c.h.b16 %v217
      %v278 = vunpack.c.l.b16 %v218
      %v279 = vunpack.c.h.b16 %v218
      %v280 = vunpack.c.l.b16 %v219
      %v281 = vunpack.c.h.b16 %v219
      %v282 = vunpack.c.l.b16 %v220
      %v283 = vunpack.c.h.b16 %v220
      %v284 = vunpack.c.l.b16 %v221
      %v285 = vunpack.c.h.b16 %v221
      %v286 = vunpack.c.l.b16 %v222
      %v287 = vunpack.c.h.b16 %v222
      %v288 = vunpack.c.l.b16 %v223
      %v289 = vunpack.c.h.b16 %v223
      %v290 = vpack.c.b16 %v278, %v274
      %v291 = vpack.c.b16 %v279, %v275
      %v292 = vpack.c.b16 %v280, %v276
      %v293 = vpack.c.b16 %v281, %v277
      %v294 = vpack.c.b16 %v286, %v282
      %v295 = vpack.c.b16 %v287, %v283
      %v296 = vpack.c.b16 %v288, %v284
      %v297 = vpack.c.b16 %v289, %v285
      %vm306 = vcmask 261120
      %v308 = vsel %vm306, %v262, 0
      %v311 = vsel %vm306, %v263, 0
      %v314 = vsel %vm306, %v264, 0
      %v317 = vsel %vm306, %v265, 0
      %319 = vmatprep.subr.bf16.mxu0 %v291
      %320 = vmatpush1.bf16.msra.mxu0 %v290
      %321 = vmatprep.subr.bf16.mxu0 %v295
      %322 = vmatpush1.bf16.msra.mxu0 %v294
      %323 = vmatprep.subr.bf16.mxu0 0
      %324 = vmatpush1.bf16.msra.mxu0 0
      %325 = vmatprep.subr.bf16.mxu0 0
      %326 = vmatpush1.bf16.msra.mxu0 0
      %327 = vmatprep.subr.bf16.mxu0 0
      %328 = vmatpush1.bf16.msra.mxu0 0
      %329 = vmatprep.subr.bf16.mxu0 0
      %330 = vmatpush1.bf16.msra.mxu0 0
      %331 = vmatprep.subr.bf16.mxu0 0
      %332 = vmatpush1.bf16.msra.mxu0 0
      %333 = vmatprep.subr.bf16.mxu0 0
      %334 = vmatpush1.bf16.msra.mxu0 0
      %335 = vmatprep.subr.bf16.mxu0 0
      %336 = vmatpush1.bf16.msra.mxu0 0
      %337 = vmatprep.subr.bf16.mxu0 0
      %338 = vmatpush1.bf16.msra.mxu0 0
      %339 = vmatprep.subr.bf16.mxu0 0
      %340 = vmatpush1.bf16.msra.mxu0 0
      %341 = vmatprep.subr.bf16.mxu0 0
      %342 = vmatpush1.bf16.msra.mxu0 0
      %343 = vmatprep.subr.bf16.mxu0 0
      %344 = vmatpush1.bf16.msra.mxu0 0
      %345 = vmatprep.subr.bf16.mxu0 0
      %346 = vmatpush1.bf16.msra.mxu0 0
      %347 = vmatprep.subr.bf16.mxu0 0
      %348 = vmatpush1.bf16.msra.mxu0 0
      %349 = vmatprep.subr.bf16.mxu0 0
      %350 = vmatpush1.bf16.msra.mxu0 0
      %351 = vmatprep.mubr.bf16.mxu0 0
      %352 = vmatmul.mubr.bf16.gmra.mrb[0].mxu0 %v308
      %v353 = vpop.f32.mrb[0].mxu0
      %v354 = vadd.f32 %v229, %v353
      %v355 = vpop.f32.mrb[0].mxu0
      %v356 = vadd.f32 %v233, %v355
      %v357 = vpop.f32.mrb[0].mxu0
      %v358 = vadd.f32 %v229, %v357
      %v359 = vpop.f32.mrb[0].mxu0
      %v360 = vadd.f32 %v233, %v359
      %361 = vmatprep.mubr.bf16.mxu0 0
      %362 = vmatmul.mubr.bf16.gmra.mrb[0].mxu0 %v311
      %v363 = vpop.f32.mrb[0].mxu0
      %v364 = vadd.f32 %v229, %v363
      %v365 = vpop.f32.mrb[0].mxu0
      %v366 = vadd.f32 %v233, %v365
      %v367 = vpop.f32.mrb[0].mxu0
      %v368 = vadd.f32 %v229, %v367
      %v369 = vpop.f32.mrb[0].mxu0
      %v370 = vadd.f32 %v233, %v369
      %371 = vmatprep.mubr.bf16.mxu0 0
      %372 = vmatmul.mubr.bf16.gmra.mrb[0].mxu0 %v314
      %v373 = vpop.f32.mrb[0].mxu0
      %v374 = vadd.f32 %v229, %v373
      %v375 = vpop.f32.mrb[0].mxu0
      %v376 = vadd.f32 %v233, %v375
      %v377 = vpop.f32.mrb[0].mxu0
      %v378 = vadd.f32 %v229, %v377
      %v379 = vpop.f32.mrb[0].mxu0
      %v380 = vadd.f32 %v233, %v379
      %381 = vmatprep.mubr.bf16.mxu0 0
      %382 = vmatmul.mubr.bf16.gmra.mrb[0].mxu0 %v317
      %v383 = vpop.f32.mrb[0].mxu0
      %v384 = vadd.f32 %v229, %v383
      %v385 = vpop.f32.mrb[0].mxu0
      %v386 = vadd.f32 %v233, %v385
      %v387 = vpop.f32.mrb[0].mxu0
      %v388 = vadd.f32 %v229, %v387
      %v389 = vpop.f32.mrb[0].mxu0
      %v390 = vadd.f32 %v233, %v389
      %391 = vdwg.mxu0
      %392 = vmatprep.subr.bf16.mxu0 %v293
      %393 = vmatpush1.bf16.msra.mxu0 %v292
      %394 = vmatprep.subr.bf16.mxu0 %v297
      %395 = vmatpush1.bf16.msra.mxu0 %v296
      %396 = vmatprep.subr.bf16.mxu0 0
      %397 = vmatpush1.bf16.msra.mxu0 0
      %398 = vmatprep.subr.bf16.mxu0 0
      %399 = vmatpush1.bf16.msra.mxu0 0
      %400 = vmatprep.subr.bf16.mxu0 0
      %401 = vmatpush1.bf16.msra.mxu0 0
      %402 = vmatprep.subr.bf16.mxu0 0
      %403 = vmatpush1.bf16.msra.mxu0 0
      %404 = vmatprep.subr.bf16.mxu0 0
      %405 = vmatpush1.bf16.msra.mxu0 0
      %406 = vmatprep.subr.bf16.mxu0 0
      %407 = vmatpush1.bf16.msra.mxu0 0
      %408 = vmatprep.subr.bf16.mxu0 0
      %409 = vmatpush1.bf16.msra.mxu0 0
      %410 = vmatprep.subr.bf16.mxu0 0
      %411 = vmatpush1.bf16.msra.mxu0 0
      %412 = vmatprep.subr.bf16.mxu0 0
      %413 = vmatpush1.bf16.msra.mxu0 0
      %414 = vmatprep.subr.bf16.mxu0 0
      %415 = vmatpush1.bf16.msra.mxu0 0
      %416 = vmatprep.subr.bf16.mxu0 0
      %417 = vmatpush1.bf16.msra.mxu0 0
      %418 = vmatprep.subr.bf16.mxu0 0
      %419 = vmatpush1.bf16.msra.mxu0 0
      %420 = vmatprep.subr.bf16.mxu0 0
      %421 = vmatpush1.bf16.msra.mxu0 0
      %422 = vmatprep.subr.bf16.mxu0 0
      %423 = vmatpush1.bf16.msra.mxu0 0
      %424 = vmatprep.mubr.bf16.mxu0 0
      %425 = vmatmul.mubr.bf16.gmra.mrb[0].mxu0 %v308
      %v426 = vpop.f32.mrb[0].mxu0
      %v427 = vadd.f32 %v237, %v426
      %v428 = vpop.f32.mrb[0].mxu0
      %v429 = vadd.f32 %v241, %v428
      %v430 = vpop.f32.mrb[0].mxu0
      %v431 = vadd.f32 %v237, %v430
      %v432 = vpop.f32.mrb[0].mxu0
      %v433 = vadd.f32 %v241, %v432
      %434 = vmatprep.mubr.bf16.mxu0 0
      %435 = vmatmul.mubr.bf16.gmra.mrb[0].mxu0 %v311
      %v436 = vpop.f32.mrb[0].mxu0
      %v437 = vadd.f32 %v237, %v436
      %v438 = vpop.f32.mrb[0].mxu0
      %v439 = vadd.f32 %v241, %v438
      %v440 = vpop.f32.mrb[0].mxu0
      %v441 = vadd.f32 %v237, %v440
      %v442 = vpop.f32.mrb[0].mxu0
      %v443 = vadd.f32 %v241, %v442
      %444 = vmatprep.mubr.bf16.mxu0 0
      %445 = vmatmul.mubr.bf16.gmra.mrb[0].mxu0 %v314
      %v446 = vpop.f32.mrb[0].mxu0
      %v447 = vadd.f32 %v237, %v446
      %v448 = vpop.f32.mrb[0].mxu0
      %v449 = vadd.f32 %v241, %v448
      %v450 = vpop.f32.mrb[0].mxu0
      %v451 = vadd.f32 %v237, %v450
      %v452 = vpop.f32.mrb[0].mxu0
      %v453 = vadd.f32 %v241, %v452
      %454 = vmatprep.mubr.bf16.mxu0 0
      %455 = vmatmul.mubr.bf16.gmra.mrb[0].mxu0 %v317
      %v456 = vpop.f32.mrb[0].mxu0
      %v457 = vadd.f32 %v237, %v456
      %v458 = vpop.f32.mrb[0].mxu0
      %v459 = vadd.f32 %v241, %v458
      %v460 = vpop.f32.mrb[0].mxu0
      %v461 = vadd.f32 %v237, %v460
      %v462 = vpop.f32.mrb[0].mxu0
      %v463 = vadd.f32 %v241, %v462
      %464 = vdwg.mxu0
      %465 = vst [vmem:[#allocation2] sm:$0xff] %v354
      %466 = vst [vmem:[#allocation2 + $0x8] sm:$0xff] %v356
      %467 = vst [vmem:[#allocation2 + $0x10] sm:$0xff] %v427
      %468 = vst [vmem:[#allocation2 + $0x18] sm:$0xff] %v429
      %469 = vst [vmem:[#allocation2 + $0x20] sm:$0xff] %v358
      %470 = vst [vmem:[#allocation2 + $0x28] sm:$0xff] %v360
      %471 = vst [vmem:[#allocation2 + $0x30] sm:$0xff] %v431
      %472 = vst [vmem:[#allocation2 + $0x38] sm:$0xff] %v433
      %473 = vst [vmem:[#allocation2 + $0x40] sm:$0xff] %v364
      %474 = vst [vmem:[#allocation2 + $0x48] sm:$0xff] %v366
      %475 = vst [vmem:[#allocation2 + $0x50] sm:$0xff] %v437
      %476 = vst [vmem:[#allocation2 + $0x58] sm:$0xff] %v439
      %477 = vst [vmem:[#allocation2 + $0x60] sm:$0xff] %v368
      %478 = vst [vmem:[#allocation2 + $0x68] sm:$0xff] %v370
      %479 = vst [vmem:[#allocation2 + $0x70] sm:$0xff] %v441
      %480 = vst [vmem:[#allocation2 + $0x78] sm:$0xff] %v443
      %481 = vst [vmem:[#allocation2 + $0x80] sm:$0xff] %v374
      %482 = vst [vmem:[#allocation2 + $0x88] sm:$0xff] %v376
      %483 = vst [vmem:[#allocation2 + $0x90] sm:$0xff] %v447
      %484 = vst [vmem:[#allocation2 + $0x98] sm:$0xff] %v449
      %485 = vst [vmem:[#allocation2 + $0xa0] sm:$0xff] %v378
      %486 = vst [vmem:[#allocation2 + $0xa8] sm:$0xff] %v380
      %487 = vst [vmem:[#allocation2 + $0xb0] sm:$0xff] %v451
      %488 = vst [vmem:[#allocation2 + $0xb8] sm:$0xff] %v453
      %489 = vst [vmem:[#allocation2 + $0xc0] sm:$0xff] %v384
      %490 = vst [vmem:[#allocation2 + $0xc8] sm:$0xff] %v386
      %491 = vst [vmem:[#allocation2 + $0xd0] sm:$0xff] %v457
      %492 = vst [vmem:[#allocation2 + $0xd8] sm:$0xff] %v459
      %493 = vst [vmem:[#allocation2 + $0xe0] sm:$0xff] %v388
      %494 = vst [vmem:[#allocation2 + $0xe8] sm:$0xff] %v390
      %495 = vst [vmem:[#allocation2 + $0xf0] sm:$0xff] %v461
      %496 = vst [vmem:[#allocation2 + $0xf8] sm:$0xff] %v463
      %v497 = vld [vmem:[%s2] sm:$0xff]
      %v498 = vld [vmem:[%s2 + $0x8] sm:$0xff]
      %v499 = vld [vmem:[%s2 + $0x10] sm:$0xff]
      %v500 = vld [vmem:[%s2 + $0x18] sm:$0xff]
      %v501 = vld [vmem:[%s2 + $0x20] sm:$0xff]
      %v502 = vld [vmem:[%s2 + $0x28] sm:$0xff]
      %v503 = vld [vmem:[%s2 + $0x30] sm:$0xff]
      %v504 = vld [vmem:[%s2 + $0x38] sm:$0xff]
      %v505 = vld [vmem:[%s2 + $0x40] sm:$0xff]
      %v506 = vld [vmem:[%s2 + $0x48] sm:$0xff]
      %v507 = vld [vmem:[%s2 + $0x50] sm:$0xff]
      %v508 = vld [vmem:[%s2 + $0x58] sm:$0xff]
      %v509 = vld [vmem:[%s2 + $0x60] sm:$0xff]
      %v510 = vld [vmem:[%s2 + $0x68] sm:$0xff]
      %v511 = vld [vmem:[%s2 + $0x70] sm:$0xff]
      %v512 = vld [vmem:[%s2 + $0x78] sm:$0xff]
      %v513 = vld [vmem:[%s2 + $0x80] sm:$0xff]
      %v514 = vld [vmem:[%s2 + $0x88] sm:$0xff]
      %v515 = vld [vmem:[%s2 + $0x90] sm:$0xff]
      %v516 = vld [vmem:[%s2 + $0x98] sm:$0xff]
      %v517 = vld [vmem:[%s2 + $0xa0] sm:$0xff]
      %v518 = vld [vmem:[%s2 + $0xa8] sm:$0xff]
      %v519 = vld [vmem:[%s2 + $0xb0] sm:$0xff]
      %v520 = vld [vmem:[%s2 + $0xb8] sm:$0xff]
      %v521 = vld [vmem:[%s2 + $0xc0] sm:$0xff]
      %v522 = vld [vmem:[%s2 + $0xc8] sm:$0xff]
      %v523 = vld [vmem:[%s2 + $0xd0] sm:$0xff]
      %v524 = vld [vmem:[%s2 + $0xd8] sm:$0xff]
      %v525 = vld [vmem:[%s2 + $0xe0] sm:$0xff]
      %v526 = vld [vmem:[%s2 + $0xe8] sm:$0xff]
      %v527 = vld [vmem:[%s2 + $0xf0] sm:$0xff]
      %v528 = vld [vmem:[%s2 + $0xf8] sm:$0xff]
      %v529 = vld [vmem:[#allocation3] sm:$0xff]
      %s530 = scalar_lea.vmem [#allocation3], 8
      %v531 = vld [vmem:[%s530] sm:$0xff]
      %s532 = smul.u32 0, 4
      %s533 = smul.addr %s532, 8
      %s534 = scalar_lea.vmem [#allocation2], %s533
      %v535 = vld [vmem:[%s534] sm:$0xff]
      %v536 = vld [vmem:[%s534 + $0x8] sm:$0xff]
      %v537 = vld [vmem:[%s534 + $0x10] sm:$0xff]
      %v538 = vld [vmem:[%s534 + $0x18] sm:$0xff]
      %v539 = vpack.c.bf16 %v529, %v529
      %v572 = vunpack.c.l.b16 %v497
      %v573 = vunpack.c.h.b16 %v497
      %v574 = vunpack.c.l.b16 %v498
      %v575 = vunpack.c.h.b16 %v498
      %v576 = vunpack.c.l.b16 %v499
      %v577 = vunpack.c.h.b16 %v499
      %v578 = vunpack.c.l.b16 %v500
      %v579 = vunpack.c.h.b16 %v500
      %v580 = vunpack.c.l.b16 %v501
      %v581 = vunpack.c.h.b16 %v501
      %v582 = vunpack.c.l.b16 %v502
      %v583 = vunpack.c.h.b16 %v502
      %v584 = vunpack.c.l.b16 %v503
      %v585 = vunpack.c.h.b16 %v503
      %v586 = vunpack.c.l.b16 %v504
      %v587 = vunpack.c.h.b16 %v504
      %v588 = vunpack.c.l.b16 %v505
      %v589 = vunpack.c.h.b16 %v505
      %v590 = vunpack.c.l.b16 %v506
      %v591 = vunpack.c.h.b16 %v506
      %v592 = vunpack.c.l.b16 %v507
      %v593 = vunpack.c.h.b16 %v507
      %v594 = vunpack.c.l.b16 %v508
      %v595 = vunpack.c.h.b16 %v508
      %v596 = vunpack.c.l.b16 %v509
      %v597 = vunpack.c.h.b16 %v509
      %v598 = vunpack.c.l.b16 %v510
      %v599 = vunpack.c.h.b16 %v510
      %v600 = vunpack.c.l.b16 %v511
      %v601 = vunpack.c.h.b16 %v511
      %v602 = vunpack.c.l.b16 %v512
      %v603 = vunpack.c.h.b16 %v512
      %v604 = vunpack.c.l.b16 %v513
      %v605 = vunpack.c.h.b16 %v513
      %v606 = vunpack.c.l.b16 %v514
      %v607 = vunpack.c.h.b16 %v514
      %v608 = vunpack.c.l.b16 %v515
      %v609 = vunpack.c.h.b16 %v515
      %v610 = vunpack.c.l.b16 %v516
      %v611 = vunpack.c.h.b16 %v516
      %v612 = vunpack.c.l.b16 %v517
      %v613 = vunpack.c.h.b16 %v517
      %v614 = vunpack.c.l.b16 %v518
      %v615 = vunpack.c.h.b16 %v518
      %v616 = vunpack.c.l.b16 %v519
      %v617 = vunpack.c.h.b16 %v519
      %v618 = vunpack.c.l.b16 %v520
      %v619 = vunpack.c.h.b16 %v520
      %v620 = vunpack.c.l.b16 %v521
      %v621 = vunpack.c.h.b16 %v521
      %v622 = vunpack.c.l.b16 %v522
      %v623 = vunpack.c.h.b16 %v522
      %v624 = vunpack.c.l.b16 %v523
      %v625 = vunpack.c.h.b16 %v523
      %v626 = vunpack.c.l.b16 %v524
      %v627 = vunpack.c.h.b16 %v524
      %v628 = vunpack.c.l.b16 %v525
      %v629 = vunpack.c.h.b16 %v525
      %v630 = vunpack.c.l.b16 %v526
      %v631 = vunpack.c.h.b16 %v526
      %v632 = vunpack.c.l.b16 %v527
      %v633 = vunpack.c.h.b16 %v527
      %v634 = vunpack.c.l.b16 %v528
      %v635 = vunpack.c.h.b16 %v528
      %v636 = vpack.c.b16 %v576, %v572
      %v637 = vpack.c.b16 %v577, %v573
      %v638 = vpack.c.b16 %v578, %v574
      %v639 = vpack.c.b16 %v579, %v575
      %v640 = vpack.c.b16 %v584, %v580
      %v641 = vpack.c.b16 %v585, %v581
      %v642 = vpack.c.b16 %v586, %v582
      %v643 = vpack.c.b16 %v587, %v583
      %v644 = vpack.c.b16 %v592, %v588
      %v645 = vpack.c.b16 %v593, %v589
      %v646 = vpack.c.b16 %v594, %v590
      %v647 = vpack.c.b16 %v595, %v591
      %v648 = vpack.c.b16 %v600, %v596
      %v649 = vpack.c.b16 %v601, %v597
      %v650 = vpack.c.b16 %v602, %v598
      %v651 = vpack.c.b16 %v603, %v599
      %v652 = vpack.c.b16 %v608, %v604
      %v653 = vpack.c.b16 %v609, %v605
      %v654 = vpack.c.b16 %v610, %v606
      %v655 = vpack.c.b16 %v611, %v607
      %v656 = vpack.c.b16 %v616, %v612
      %v657 = vpack.c.b16 %v617, %v613
      %v658 = vpack.c.b16 %v618, %v614
      %v659 = vpack.c.b16 %v619, %v615
      %v660 = vpack.c.b16 %v624, %v620
      %v661 = vpack.c.b16 %v625, %v621
      %v662 = vpack.c.b16 %v626, %v622
      %v663 = vpack.c.b16 %v627, %v623
      %v664 = vpack.c.b16 %v632, %v628
      %v665 = vpack.c.b16 %v633, %v629
      %v666 = vpack.c.b16 %v634, %v630
      %v667 = vpack.c.b16 %v635, %v631
      %700 = vmatprep.subr.bf16.mxu0 %v637
      %701 = vmatpush1.bf16.msra.mxu0 %v636
      %702 = vmatprep.subr.bf16.mxu0 %v641
      %703 = vmatpush1.bf16.msra.mxu0 %v640
      %704 = vmatprep.subr.bf16.mxu0 %v645
      %705 = vmatpush1.bf16.msra.mxu0 %v644
      %706 = vmatprep.subr.bf16.mxu0 %v649
      %707 = vmatpush1.bf16.msra.mxu0 %v648
      %708 = vmatprep.subr.bf16.mxu0 %v653
      %709 = vmatpush1.bf16.msra.mxu0 %v652
      %710 = vmatprep.subr.bf16.mxu0 %v657
      %711 = vmatpush1.bf16.msra.mxu0 %v656
      %712 = vmatprep.subr.bf16.mxu0 %v661
      %713 = vmatpush1.bf16.msra.mxu0 %v660
      %714 = vmatprep.subr.bf16.mxu0 %v665
      %715 = vmatpush1.bf16.msra.mxu0 %v664
      %716 = vmatprep.subr.bf16.mxu0 0
      %717 = vmatpush1.bf16.msra.mxu0 0
      %718 = vmatprep.subr.bf16.mxu0 0
      %719 = vmatpush1.bf16.msra.mxu0 0
      %720 = vmatprep.subr.bf16.mxu0 0
      %721 = vmatpush1.bf16.msra.mxu0 0
      %722 = vmatprep.subr.bf16.mxu0 0
      %723 = vmatpush1.bf16.msra.mxu0 0
      %724 = vmatprep.subr.bf16.mxu0 0
      %725 = vmatpush1.bf16.msra.mxu0 0
      %726 = vmatprep.subr.bf16.mxu0 0
      %727 = vmatpush1.bf16.msra.mxu0 0
      %728 = vmatprep.subr.bf16.mxu0 0
      %729 = vmatpush1.bf16.msra.mxu0 0
      %730 = vmatprep.subr.bf16.mxu0 0
      %731 = vmatpush1.bf16.msra.mxu0 0
      %732 = vmatprep.mubr.bf16.mxu0 0
      %733 = vmatmul.mubr.bf16.gmra.mrb[0].mxu0 %v539
      %v734 = vpop.f32.mrb[0].mxu0
      %v735 = vadd.f32 0.0, %v734
      %v736 = vpop.f32.mrb[0].mxu0
      %v737 = vadd.f32 0.0, %v736
      %v738 = vpop.f32.mrb[0].mxu0
      %v739 = vpop.f32.mrb[0].mxu0
      %740 = vdwg.mxu0
      %741 = vmatprep.subr.bf16.mxu0 %v639
      %742 = vmatpush1.bf16.msra.mxu0 %v638
      %743 = vmatprep.subr.bf16.mxu0 %v643
      %744 = vmatpush1.bf16.msra.mxu0 %v642
      %745 = vmatprep.subr.bf16.mxu0 %v647
      %746 = vmatpush1.bf16.msra.mxu0 %v646
      %747 = vmatprep.subr.bf16.mxu0 %v651
      %748 = vmatpush1.bf16.msra.mxu0 %v650
      %749 = vmatprep.subr.bf16.mxu0 %v655
      %750 = vmatpush1.bf16.msra.mxu0 %v654
      %751 = vmatprep.subr.bf16.mxu0 %v659
      %752 = vmatpush1.bf16.msra.mxu0 %v658
      %753 = vmatprep.subr.bf16.mxu0 %v663
      %754 = vmatpush1.bf16.msra.mxu0 %v662
      %755 = vmatprep.subr.bf16.mxu0 %v667
      %756 = vmatpush1.bf16.msra.mxu0 %v666
      %757 = vmatprep.subr.bf16.mxu0 0
      %758 = vmatpush1.bf16.msra.mxu0 0
      %759 = vmatprep.subr.bf16.mxu0 0
      %760 = vmatpush1.bf16.msra.mxu0 0
      %761 = vmatprep.subr.bf16.mxu0 0
      %762 = vmatpush1.bf16.msra.mxu0 0
      %763 = vmatprep.subr.bf16.mxu0 0
      %764 = vmatpush1.bf16.msra.mxu0 0
      %765 = vmatprep.subr.bf16.mxu0 0
      %766 = vmatpush1.bf16.msra.mxu0 0
      %767 = vmatprep.subr.bf16.mxu0 0
      %768 = vmatpush1.bf16.msra.mxu0 0
      %769 = vmatprep.subr.bf16.mxu0 0
      %770 = vmatpush1.bf16.msra.mxu0 0
      %771 = vmatprep.subr.bf16.mxu0 0
      %772 = vmatpush1.bf16.msra.mxu0 0
      %773 = vmatprep.mubr.bf16.mxu0 0
      %774 = vmatmul.mubr.bf16.gmra.mrb[0].mxu0 %v539
      %v775 = vpop.f32.mrb[0].mxu0
      %v776 = vadd.f32 0.0, %v775
      %v777 = vpop.f32.mrb[0].mxu0
      %v778 = vadd.f32 0.0, %v777
      %v779 = vpop.f32.mrb[0].mxu0
      %v780 = vpop.f32.mrb[0].mxu0
      %781 = vdwg.mxu0
      %v782 = vadd.f32 %v535, %v735
      %v783 = vadd.f32 %v536, %v737
      %v784 = vadd.f32 %v537, %v776
      %v785 = vadd.f32 %v538, %v778
      %v786 = vmul.f32 %v782, 0.5
      %v787 = vtanh.pop %v786
      %v788 = vmul.f32 %v787, 0.5
      %v789 = vadd.f32 %v788, 0.5
      %v790 = vmul.f32 %v783, 0.5
      %v791 = vtanh.pop %v790
      %v792 = vmul.f32 %v791, 0.5
      %v793 = vadd.f32 %v792, 0.5
      %v794 = vtanh.pop %v784
      %v795 = vmul.f32 %v785, 0.5
      %v796 = vtanh.pop %v795
      %v797 = vmul.f32 %v796, 0.5
      %v798 = vadd.f32 %v797, 0.5
      %v799 = vmul.f32 %v793, %v531
      %v800 = vmul.f32 %v789, %v794
      %v801 = vadd.f32 %v799, %v800
      %v802 = vtanh.pop %v801
      %v803 = vmul.f32 %v798, %v802
      %v804 = vpack.c.bf16 %v803, %v803
      %805 = vst [vmem:[%s199] sm:$0xf] %v804
      %s806 = smul.u32 1, 4
      %s807 = smul.addr %s806, 8
      %s808 = scalar_lea.vmem [#allocation2], %s807
      %v809 = vld [vmem:[%s808] sm:$0xff]
      %v810 = vld [vmem:[%s808 + $0x8] sm:$0xff]
      %v811 = vld [vmem:[%s808 + $0x10] sm:$0xff]
      %v812 = vld [vmem:[%s808 + $0x18] sm:$0xff]
      %813 = vmatprep.subr.bf16.mxu0 %v637
      %814 = vmatpush1.bf16.msra.mxu0 %v636
      %815 = vmatprep.subr.bf16.mxu0 %v641
      %816 = vmatpush1.bf16.msra.mxu0 %v640
      %817 = vmatprep.subr.bf16.mxu0 %v645
      %818 = vmatpush1.bf16.msra.mxu0 %v644
      %819 = vmatprep.subr.bf16.mxu0 %v649
      %820 = vmatpush1.bf16.msra.mxu0 %v648
      %821 = vmatprep.subr.bf16.mxu0 %v653
      %822 = vmatpush1.bf16.msra.mxu0 %v652
      %823 = vmatprep.subr.bf16.mxu0 %v657
      %824 = vmatpush1.bf16.msra.mxu0 %v656
      %825 = vmatprep.subr.bf16.mxu0 %v661
      %826 = vmatpush1.bf16.msra.mxu0 %v660
      %827 = vmatprep.subr.bf16.mxu0 %v665
      %828 = vmatpush1.bf16.msra.mxu0 %v664
      %829 = vmatprep.subr.bf16.mxu0 0
      %830 = vmatpush1.bf16.msra.mxu0 0
      %831 = vmatprep.subr.bf16.mxu0 0
      %832 = vmatpush1.bf16.msra.mxu0 0
      %833 = vmatprep.subr.bf16.mxu0 0
      %834 = vmatpush1.bf16.msra.mxu0 0
      %835 = vmatprep.subr.bf16.mxu0 0
      %836 = vmatpush1.bf16.msra.mxu0 0
      %837 = vmatprep.subr.bf16.mxu0 0
      %838 = vmatpush1.bf16.msra.mxu0 0
      %839 = vmatprep.subr.bf16.mxu0 0
      %840 = vmatpush1.bf16.msra.mxu0 0
      %841 = vmatprep.subr.bf16.mxu0 0
      %842 = vmatpush1.bf16.msra.mxu0 0
      %843 = vmatprep.subr.bf16.mxu0 0
      %844 = vmatpush1.bf16.msra.mxu0 0
      %845 = vmatprep.mubr.bf16.mxu0 0
      %846 = vmatmul.mubr.bf16.gmra.mrb[0].mxu0 %v804
      %v847 = vpop.f32.mrb[0].mxu0
      %v848 = vadd.f32 0.0, %v847
      %v849 = vpop.f32.mrb[0].mxu0
      %v850 = vadd.f32 0.0, %v849
      %v851 = vpop.f32.mrb[0].mxu0
      %v852 = vpop.f32.mrb[0].mxu0
      %853 = vdwg.mxu0
      %854 = vmatprep.subr.bf16.mxu0 %v639
      %855 = vmatpush1.bf16.msra.mxu0 %v638
      %856 = vmatprep.subr.bf16.mxu0 %v643
      %857 = vmatpush1.bf16.msra.mxu0 %v642
      %858 = vmatprep.subr.bf16.mxu0 %v647
      %859 = vmatpush1.bf16.msra.mxu0 %v646
      %860 = vmatprep.subr.bf16.mxu0 %v651
      %861 = vmatpush1.bf16.msra.mxu0 %v650
      %862 = vmatprep.subr.bf16.mxu0 %v655
      %863 = vmatpush1.bf16.msra.mxu0 %v654
      %864 = vmatprep.subr.bf16.mxu0 %v659
      %865 = vmatpush1.bf16.msra.mxu0 %v658
      %866 = vmatprep.subr.bf16.mxu0 %v663
      %867 = vmatpush1.bf16.msra.mxu0 %v662
      %868 = vmatprep.subr.bf16.mxu0 %v667
      %869 = vmatpush1.bf16.msra.mxu0 %v666
      %870 = vmatprep.subr.bf16.mxu0 0
      %871 = vmatpush1.bf16.msra.mxu0 0
      %872 = vmatprep.subr.bf16.mxu0 0
      %873 = vmatpush1.bf16.msra.mxu0 0
      %874 = vmatprep.subr.bf16.mxu0 0
      %875 = vmatpush1.bf16.msra.mxu0 0
      %876 = vmatprep.subr.bf16.mxu0 0
      %877 = vmatpush1.bf16.msra.mxu0 0
      %878 = vmatprep.subr.bf16.mxu0 0
      %879 = vmatpush1.bf16.msra.mxu0 0
      %880 = vmatprep.subr.bf16.mxu0 0
      %881 = vmatpush1.bf16.msra.mxu0 0
      %882 = vmatprep.subr.bf16.mxu0 0
      %883 = vmatpush1.bf16.msra.mxu0 0
      %884 = vmatprep.subr.bf16.mxu0 0
      %885 = vmatpush1.bf16.msra.mxu0 0
      %886 = vmatprep.mubr.bf16.mxu0 0
      %887 = vmatmul.mubr.bf16.gmra.mrb[0].mxu0 %v804
      %v888 = vpop.f32.mrb[0].mxu0
      %v889 = vadd.f32 0.0, %v888
      %v890 = vpop.f32.mrb[0].mxu0
      %v891 = vadd.f32 0.0, %v890
      %v892 = vpop.f32.mrb[0].mxu0
      %v893 = vpop.f32.mrb[0].mxu0
      %894 = vdwg.mxu0
      %v895 = vadd.f32 %v809, %v848
      %v896 = vadd.f32 %v810, %v850
      %v897 = vadd.f32 %v811, %v889
      %v898 = vadd.f32 %v812, %v891
      %v899 = vmul.f32 %v895, 0.5
      %v900 = vtanh.pop %v899
      %v901 = vmul.f32 %v900, 0.5
      %v902 = vadd.f32 %v901, 0.5
      %v903 = vmul.f32 %v896, 0.5
      %v904 = vtanh.pop %v903
      %v905 = vmul.f32 %v904, 0.5
      %v906 = vadd.f32 %v905, 0.5
      %v907 = vtanh.pop %v897
      %v908 = vmul.f32 %v898, 0.5
      %v909 = vtanh.pop %v908
      %v910 = vmul.f32 %v909, 0.5
      %v911 = vadd.f32 %v910, 0.5
      %v912 = vmul.f32 %v906, %v801
      %v913 = vmul.f32 %v902, %v907
      %v914 = vadd.f32 %v912, %v913
      %v915 = vtanh.pop %v914
      %v916 = vmul.f32 %v911, %v915
      %v917 = vpack.c.bf16 %v916, %v916
      %s918 = scalar_lea.vmem %s199, 4
      %919 = vst [vmem:[%s918] sm:$0xf] %v917
      %s920 = smul.u32 2, 4
      %s921 = smul.addr %s920, 8
      %s922 = scalar_lea.vmem [#allocation2], %s921
      %v923 = vld [vmem:[%s922] sm:$0xff]
      %v924 = vld [vmem:[%s922 + $0x8] sm:$0xff]
      %v925 = vld [vmem:[%s922 + $0x10] sm:$0xff]
      %v926 = vld [vmem:[%s922 + $0x18] sm:$0xff]
      %927 = vmatprep.subr.bf16.mxu0 %v637
      %928 = vmatpush1.bf16.msra.mxu0 %v636
      %929 = vmatprep.subr.bf16.mxu0 %v641
      %930 = vmatpush1.bf16.msra.mxu0 %v640
      %931 = vmatprep.subr.bf16.mxu0 %v645
      %932 = vmatpush1.bf16.msra.mxu0 %v644
      %933 = vmatprep.subr.bf16.mxu0 %v649
      %934 = vmatpush1.bf16.msra.mxu0 %v648
      %935 = vmatprep.subr.bf16.mxu0 %v653
      %936 = vmatpush1.bf16.msra.mxu0 %v652
      %937 = vmatprep.subr.bf16.mxu0 %v657
      %938 = vmatpush1.bf16.msra.mxu0 %v656
      %939 = vmatprep.subr.bf16.mxu0 %v661
      %940 = vmatpush1.bf16.msra.mxu0 %v660
      %941 = vmatprep.subr.bf16.mxu0 %v665
      %942 = vmatpush1.bf16.msra.mxu0 %v664
      %943 = vmatprep.subr.bf16.mxu0 0
      %944 = vmatpush1.bf16.msra.mxu0 0
      %945 = vmatprep.subr.bf16.mxu0 0
      %946 = vmatpush1.bf16.msra.mxu0 0
      %947 = vmatprep.subr.bf16.mxu0 0
      %948 = vmatpush1.bf16.msra.mxu0 0
      %949 = vmatprep.subr.bf16.mxu0 0
      %950 = vmatpush1.bf16.msra.mxu0 0
      %951 = vmatprep.subr.bf16.mxu0 0
      %952 = vmatpush1.bf16.msra.mxu0 0
      %953 = vmatprep.subr.bf16.mxu0 0
      %954 = vmatpush1.bf16.msra.mxu0 0
      %955 = vmatprep.subr.bf16.mxu0 0
      %956 = vmatpush1.bf16.msra.mxu0 0
      %957 = vmatprep.subr.bf16.mxu0 0
      %958 = vmatpush1.bf16.msra.mxu0 0
      %959 = vmatprep.mubr.bf16.mxu0 0
      %960 = vmatmul.mubr.bf16.gmra.mrb[0].mxu0 %v917
      %v961 = vpop.f32.mrb[0].mxu0
      %v962 = vadd.f32 0.0, %v961
      %v963 = vpop.f32.mrb[0].mxu0
      %v964 = vadd.f32 0.0, %v963
      %v965 = vpop.f32.mrb[0].mxu0
      %v966 = vpop.f32.mrb[0].mxu0
      %967 = vdwg.mxu0
      %968 = vmatprep.subr.bf16.mxu0 %v639
      %969 = vmatpush1.bf16.msra.mxu0 %v638
      %970 = vmatprep.subr.bf16.mxu0 %v643
      %971 = vmatpush1.bf16.msra.mxu0 %v642
      %972 = vmatprep.subr.bf16.mxu0 %v647
      %973 = vmatpush1.bf16.msra.mxu0 %v646
      %974 = vmatprep.subr.bf16.mxu0 %v651
      %975 = vmatpush1.bf16.msra.mxu0 %v650
      %976 = vmatprep.subr.bf16.mxu0 %v655
      %977 = vmatpush1.bf16.msra.mxu0 %v654
      %978 = vmatprep.subr.bf16.mxu0 %v659
      %979 = vmatpush1.bf16.msra.mxu0 %v658
      %980 = vmatprep.subr.bf16.mxu0 %v663
      %981 = vmatpush1.bf16.msra.mxu0 %v662
      %982 = vmatprep.subr.bf16.mxu0 %v667
      %983 = vmatpush1.bf16.msra.mxu0 %v666
      %984 = vmatprep.subr.bf16.mxu0 0
      %985 = vmatpush1.bf16.msra.mxu0 0
      %986 = vmatprep.subr.bf16.mxu0 0
      %987 = vmatpush1.bf16.msra.mxu0 0
      %988 = vmatprep.subr.bf16.mxu0 0
      %989 = vmatpush1.bf16.msra.mxu0 0
      %990 = vmatprep.subr.bf16.mxu0 0
      %991 = vmatpush1.bf16.msra.mxu0 0
      %992 = vmatprep.subr.bf16.mxu0 0
      %993 = vmatpush1.bf16.msra.mxu0 0
      %994 = vmatprep.subr.bf16.mxu0 0
      %995 = vmatpush1.bf16.msra.mxu0 0
      %996 = vmatprep.subr.bf16.mxu0 0
      %997 = vmatpush1.bf16.msra.mxu0 0
      %998 = vmatprep.subr.bf16.mxu0 0
      %999 = vmatpush1.bf16.msra.mxu0 0
      %1000 = vmatprep.mubr.bf16.mxu0 0
      %1001 = vmatmul.mubr.bf16.gmra.mrb[0].mxu0 %v917
      %v1002 = vpop.f32.mrb[0].mxu0
      %v1003 = vadd.f32 0.0, %v1002
      %v1004 = vpop.f32.mrb[0].mxu0
      %v1005 = vadd.f32 0.0, %v1004
      %v1006 = vpop.f32.mrb[0].mxu0
      %v1007 = vpop.f32.mrb[0].mxu0
      %1008 = vdwg.mxu0
      %v1009 = vadd.f32 %v923, %v962
      %v1010 = vadd.f32 %v924, %v964
      %v1011 = vadd.f32 %v925, %v1003
      %v1012 = vadd.f32 %v926, %v1005
      %v1013 = vmul.f32 %v1009, 0.5
      %v1014 = vtanh.pop %v1013
      %v1015 = vmul.f32 %v1014, 0.5
      %v1016 = vadd.f32 %v1015, 0.5
      %v1017 = vmul.f32 %v1010, 0.5
      %v1018 = vtanh.pop %v1017
      %v1019 = vmul.f32 %v1018, 0.5
      %v1020 = vadd.f32 %v1019, 0.5
      %v1021 = vtanh.pop %v1011
      %v1022 = vmul.f32 %v1012, 0.5
      %v1023 = vtanh.pop %v1022
      %v1024 = vmul.f32 %v1023, 0.5
      %v1025 = vadd.f32 %v1024, 0.5
      %v1026 = vmul.f32 %v1020, %v914
      %v1027 = vmul.f32 %v1016, %v1021
      %v1028 = vadd.f32 %v1026, %v1027
      %v1029 = vtanh.pop %v1028
      %v1030 = vmul.f32 %v1025, %v1029
      %v1031 = vpack.c.bf16 %v1030, %v1030
      %s1032 = scalar_lea.vmem %s199, 8
      %1033 = vst [vmem:[%s1032] sm:$0xf] %v1031
      %s1034 = smul.u32 3, 4
      %s1035 = smul.addr %s1034, 8
      %s1036 = scalar_lea.vmem [#allocation2], %s1035
      %v1037 = vld [vmem:[%s1036] sm:$0xff]
      %v1038 = vld [vmem:[%s1036 + $0x8] sm:$0xff]
      %v1039 = vld [vmem:[%s1036 + $0x10] sm:$0xff]
      %v1040 = vld [vmem:[%s1036 + $0x18] sm:$0xff]
      %1041 = vmatprep.subr.bf16.mxu0 %v637
      %1042 = vmatpush1.bf16.msra.mxu0 %v636
      %1043 = vmatprep.subr.bf16.mxu0 %v641
      %1044 = vmatpush1.bf16.msra.mxu0 %v640
      %1045 = vmatprep.subr.bf16.mxu0 %v645
      %1046 = vmatpush1.bf16.msra.mxu0 %v644
      %1047 = vmatprep.subr.bf16.mxu0 %v649
      %1048 = vmatpush1.bf16.msra.mxu0 %v648
      %1049 = vmatprep.subr.bf16.mxu0 %v653
      %1050 = vmatpush1.bf16.msra.mxu0 %v652
      %1051 = vmatprep.subr.bf16.mxu0 %v657
      %1052 = vmatpush1.bf16.msra.mxu0 %v656
      %1053 = vmatprep.subr.bf16.mxu0 %v661
      %1054 = vmatpush1.bf16.msra.mxu0 %v660
      %1055 = vmatprep.subr.bf16.mxu0 %v665
      %1056 = vmatpush1.bf16.msra.mxu0 %v664
      %1057 = vmatprep.subr.bf16.mxu0 0
      %1058 = vmatpush1.bf16.msra.mxu0 0
      %1059 = vmatprep.subr.bf16.mxu0 0
      %1060 = vmatpush1.bf16.msra.mxu0 0
      %1061 = vmatprep.subr.bf16.mxu0 0
      %1062 = vmatpush1.bf16.msra.mxu0 0
      %1063 = vmatprep.subr.bf16.mxu0 0
      %1064 = vmatpush1.bf16.msra.mxu0 0
      %1065 = vmatprep.subr.bf16.mxu0 0
      %1066 = vmatpush1.bf16.msra.mxu0 0
      %1067 = vmatprep.subr.bf16.mxu0 0
      %1068 = vmatpush1.bf16.msra.mxu0 0
      %1069 = vmatprep.subr.bf16.mxu0 0
      %1070 = vmatpush1.bf16.msra.mxu0 0
      %1071 = vmatprep.subr.bf16.mxu0 0
      %1072 = vmatpush1.bf16.msra.mxu0 0
      %1073 = vmatprep.mubr.bf16.mxu0 0
      %1074 = vmatmul.mubr.bf16.gmra.mrb[0].mxu0 %v1031
      %v1075 = vpop.f32.mrb[0].mxu0
      %v1076 = vadd.f32 0.0, %v1075
      %v1077 = vpop.f32.mrb[0].mxu0
      %v1078 = vadd.f32 0.0, %v1077
      %v1079 = vpop.f32.mrb[0].mxu0
      %v1080 = vpop.f32.mrb[0].mxu0
      %1081 = vdwg.mxu0
      %1082 = vmatprep.subr.bf16.mxu0 %v639
      %1083 = vmatpush1.bf16.msra.mxu0 %v638
      %1084 = vmatprep.subr.bf16.mxu0 %v643
      %1085 = vmatpush1.bf16.msra.mxu0 %v642
      %1086 = vmatprep.subr.bf16.mxu0 %v647
      %1087 = vmatpush1.bf16.msra.mxu0 %v646
      %1088 = vmatprep.subr.bf16.mxu0 %v651
      %1089 = vmatpush1.bf16.msra.mxu0 %v650
      %1090 = vmatprep.subr.bf16.mxu0 %v655
      %1091 = vmatpush1.bf16.msra.mxu0 %v654
      %1092 = vmatprep.subr.bf16.mxu0 %v659
      %1093 = vmatpush1.bf16.msra.mxu0 %v658
      %1094 = vmatprep.subr.bf16.mxu0 %v663
      %1095 = vmatpush1.bf16.msra.mxu0 %v662
      %1096 = vmatprep.subr.bf16.mxu0 %v667
      %1097 = vmatpush1.bf16.msra.mxu0 %v666
      %1098 = vmatprep.subr.bf16.mxu0 0
      %1099 = vmatpush1.bf16.msra.mxu0 0
      %1100 = vmatprep.subr.bf16.mxu0 0
      %1101 = vmatpush1.bf16.msra.mxu0 0
      %1102 = vmatprep.subr.bf16.mxu0 0
      %1103 = vmatpush1.bf16.msra.mxu0 0
      %1104 = vmatprep.subr.bf16.mxu0 0
      %1105 = vmatpush1.bf16.msra.mxu0 0
      %1106 = vmatprep.subr.bf16.mxu0 0
      %1107 = vmatpush1.bf16.msra.mxu0 0
      %1108 = vmatprep.subr.bf16.mxu0 0
      %1109 = vmatpush1.bf16.msra.mxu0 0
      %1110 = vmatprep.subr.bf16.mxu0 0
      %1111 = vmatpush1.bf16.msra.mxu0 0
      %1112 = vmatprep.subr.bf16.mxu0 0
      %1113 = vmatpush1.bf16.msra.mxu0 0
      %1114 = vmatprep.mubr.bf16.mxu0 0
      %1115 = vmatmul.mubr.bf16.gmra.mrb[0].mxu0 %v1031
      %v1116 = vpop.f32.mrb[0].mxu0
      %v1117 = vadd.f32 0.0, %v1116
      %v1118 = vpop.f32.mrb[0].mxu0
      %v1119 = vadd.f32 0.0, %v1118
      %v1120 = vpop.f32.mrb[0].mxu0
      %v1121 = vpop.f32.mrb[0].mxu0
      %1122 = vdwg.mxu0
      %v1123 = vadd.f32 %v1037, %v1076
      %v1124 = vadd.f32 %v1038, %v1078
      %v1125 = vadd.f32 %v1039, %v1117
      %v1126 = vadd.f32 %v1040, %v1119
      %v1127 = vmul.f32 %v1123, 0.5
      %v1128 = vtanh.pop %v1127
      %v1129 = vmul.f32 %v1128, 0.5
      %v1130 = vadd.f32 %v1129, 0.5
      %v1131 = vmul.f32 %v1124, 0.5
      %v1132 = vtanh.pop %v1131
      %v1133 = vmul.f32 %v1132, 0.5
      %v1134 = vadd.f32 %v1133, 0.5
      %v1135 = vtanh.pop %v1125
      %v1136 = vmul.f32 %v1126, 0.5
      %v1137 = vtanh.pop %v1136
      %v1138 = vmul.f32 %v1137, 0.5
      %v1139 = vadd.f32 %v1138, 0.5
      %v1140 = vmul.f32 %v1134, %v1028
      %v1141 = vmul.f32 %v1130, %v1135
      %v1142 = vadd.f32 %v1140, %v1141
      %v1143 = vtanh.pop %v1142
      %v1144 = vmul.f32 %v1139, %v1143
      %v1145 = vpack.c.bf16 %v1144, %v1144
      %s1146 = scalar_lea.vmem %s199, 12
      %1147 = vst [vmem:[%s1146] sm:$0xf] %v1145
      %s1148 = smul.u32 4, 4
      %s1149 = smul.addr %s1148, 8
      %s1150 = scalar_lea.vmem [#allocation2], %s1149
      %v1151 = vld [vmem:[%s1150] sm:$0xff]
      %v1152 = vld [vmem:[%s1150 + $0x8] sm:$0xff]
      %v1153 = vld [vmem:[%s1150 + $0x10] sm:$0xff]
      %v1154 = vld [vmem:[%s1150 + $0x18] sm:$0xff]
      %1155 = vmatprep.subr.bf16.mxu0 %v637
      %1156 = vmatpush1.bf16.msra.mxu0 %v636
      %1157 = vmatprep.subr.bf16.mxu0 %v641
      %1158 = vmatpush1.bf16.msra.mxu0 %v640
      %1159 = vmatprep.subr.bf16.mxu0 %v645
      %1160 = vmatpush1.bf16.msra.mxu0 %v644
      %1161 = vmatprep.subr.bf16.mxu0 %v649
      %1162 = vmatpush1.bf16.msra.mxu0 %v648
      %1163 = vmatprep.subr.bf16.mxu0 %v653
      %1164 = vmatpush1.bf16.msra.mxu0 %v652
      %1165 = vmatprep.subr.bf16.mxu0 %v657
      %1166 = vmatpush1.bf16.msra.mxu0 %v656
      %1167 = vmatprep.subr.bf16.mxu0 %v661
      %1168 = vmatpush1.bf16.msra.mxu0 %v660
      %1169 = vmatprep.subr.bf16.mxu0 %v665
      %1170 = vmatpush1.bf16.msra.mxu0 %v664
      %1171 = vmatprep.subr.bf16.mxu0 0
      %1172 = vmatpush1.bf16.msra.mxu0 0
      %1173 = vmatprep.subr.bf16.mxu0 0
      %1174 = vmatpush1.bf16.msra.mxu0 0
      %1175 = vmatprep.subr.bf16.mxu0 0
      %1176 = vmatpush1.bf16.msra.mxu0 0
      %1177 = vmatprep.subr.bf16.mxu0 0
      %1178 = vmatpush1.bf16.msra.mxu0 0
      %1179 = vmatprep.subr.bf16.mxu0 0
      %1180 = vmatpush1.bf16.msra.mxu0 0
      %1181 = vmatprep.subr.bf16.mxu0 0
      %1182 = vmatpush1.bf16.msra.mxu0 0
      %1183 = vmatprep.subr.bf16.mxu0 0
      %1184 = vmatpush1.bf16.msra.mxu0 0
      %1185 = vmatprep.subr.bf16.mxu0 0
      %1186 = vmatpush1.bf16.msra.mxu0 0
      %1187 = vmatprep.mubr.bf16.mxu0 0
      %1188 = vmatmul.mubr.bf16.gmra.mrb[0].mxu0 %v1145
      %v1189 = vpop.f32.mrb[0].mxu0
      %v1190 = vadd.f32 0.0, %v1189
      %v1191 = vpop.f32.mrb[0].mxu0
      %v1192 = vadd.f32 0.0, %v1191
      %v1193 = vpop.f32.mrb[0].mxu0
      %v1194 = vpop.f32.mrb[0].mxu0
      %1195 = vdwg.mxu0
      %1196 = vmatprep.subr.bf16.mxu0 %v639
      %1197 = vmatpush1.bf16.msra.mxu0 %v638
      %1198 = vmatprep.subr.bf16.mxu0 %v643
      %1199 = vmatpush1.bf16.msra.mxu0 %v642
      %1200 = vmatprep.subr.bf16.mxu0 %v647
      %1201 = vmatpush1.bf16.msra.mxu0 %v646
      %1202 = vmatprep.subr.bf16.mxu0 %v651
      %1203 = vmatpush1.bf16.msra.mxu0 %v650
      %1204 = vmatprep.subr.bf16.mxu0 %v655
      %1205 = vmatpush1.bf16.msra.mxu0 %v654
      %1206 = vmatprep.subr.bf16.mxu0 %v659
      %1207 = vmatpush1.bf16.msra.mxu0 %v658
      %1208 = vmatprep.subr.bf16.mxu0 %v663
      %1209 = vmatpush1.bf16.msra.mxu0 %v662
      %1210 = vmatprep.subr.bf16.mxu0 %v667
      %1211 = vmatpush1.bf16.msra.mxu0 %v666
      %1212 = vmatprep.subr.bf16.mxu0 0
      %1213 = vmatpush1.bf16.msra.mxu0 0
      %1214 = vmatprep.subr.bf16.mxu0 0
      %1215 = vmatpush1.bf16.msra.mxu0 0
      %1216 = vmatprep.subr.bf16.mxu0 0
      %1217 = vmatpush1.bf16.msra.mxu0 0
      %1218 = vmatprep.subr.bf16.mxu0 0
      %1219 = vmatpush1.bf16.msra.mxu0 0
      %1220 = vmatprep.subr.bf16.mxu0 0
      %1221 = vmatpush1.bf16.msra.mxu0 0
      %1222 = vmatprep.subr.bf16.mxu0 0
      %1223 = vmatpush1.bf16.msra.mxu0 0
      %1224 = vmatprep.subr.bf16.mxu0 0
      %1225 = vmatpush1.bf16.msra.mxu0 0
      %1226 = vmatprep.subr.bf16.mxu0 0
      %1227 = vmatpush1.bf16.msra.mxu0 0
      %1228 = vmatprep.mubr.bf16.mxu0 0
      %1229 = vmatmul.mubr.bf16.gmra.mrb[0].mxu0 %v1145
      %v1230 = vpop.f32.mrb[0].mxu0
      %v1231 = vadd.f32 0.0, %v1230
      %v1232 = vpop.f32.mrb[0].mxu0
      %v1233 = vadd.f32 0.0, %v1232
      %v1234 = vpop.f32.mrb[0].mxu0
      %v1235 = vpop.f32.mrb[0].mxu0
      %1236 = vdwg.mxu0
      %v1237 = vadd.f32 %v1151, %v1190
      %v1238 = vadd.f32 %v1152, %v1192
      %v1239 = vadd.f32 %v1153, %v1231
      %v1240 = vadd.f32 %v1154, %v1233
      %v1241 = vmul.f32 %v1237, 0.5
      %v1242 = vtanh.pop %v1241
      %v1243 = vmul.f32 %v1242, 0.5
      %v1244 = vadd.f32 %v1243, 0.5
      %v1245 = vmul.f32 %v1238, 0.5
      %v1246 = vtanh.pop %v1245
      %v1247 = vmul.f32 %v1246, 0.5
      %v1248 = vadd.f32 %v1247, 0.5
      %v1249 = vtanh.pop %v1239
      %v1250 = vmul.f32 %v1240, 0.5
      %v1251 = vtanh.pop %v1250
      %v1252 = vmul.f32 %v1251, 0.5
      %v1253 = vadd.f32 %v1252, 0.5
      %v1254 = vmul.f32 %v1248, %v1142
      %v1255 = vmul.f32 %v1244, %v1249
      %v1256 = vadd.f32 %v1254, %v1255
      %v1257 = vtanh.pop %v1256
      %v1258 = vmul.f32 %v1253, %v1257
      %v1259 = vpack.c.bf16 %v1258, %v1258
      %s1260 = scalar_lea.vmem %s199, 16
      %1261 = vst [vmem:[%s1260] sm:$0xf] %v1259
      %s1262 = smul.u32 5, 4
      %s1263 = smul.addr %s1262, 8
      %s1264 = scalar_lea.vmem [#allocation2], %s1263
      %v1265 = vld [vmem:[%s1264] sm:$0xff]
      %v1266 = vld [vmem:[%s1264 + $0x8] sm:$0xff]
      %v1267 = vld [vmem:[%s1264 + $0x10] sm:$0xff]
      %v1268 = vld [vmem:[%s1264 + $0x18] sm:$0xff]
      %1269 = vmatprep.subr.bf16.mxu0 %v637
      %1270 = vmatpush1.bf16.msra.mxu0 %v636
      %1271 = vmatprep.subr.bf16.mxu0 %v641
      %1272 = vmatpush1.bf16.msra.mxu0 %v640
      %1273 = vmatprep.subr.bf16.mxu0 %v645
      %1274 = vmatpush1.bf16.msra.mxu0 %v644
      %1275 = vmatprep.subr.bf16.mxu0 %v649
      %1276 = vmatpush1.bf16.msra.mxu0 %v648
      %1277 = vmatprep.subr.bf16.mxu0 %v653
      %1278 = vmatpush1.bf16.msra.mxu0 %v652
      %1279 = vmatprep.subr.bf16.mxu0 %v657
      %1280 = vmatpush1.bf16.msra.mxu0 %v656
      %1281 = vmatprep.subr.bf16.mxu0 %v661
      %1282 = vmatpush1.bf16.msra.mxu0 %v660
      %1283 = vmatprep.subr.bf16.mxu0 %v665
      %1284 = vmatpush1.bf16.msra.mxu0 %v664
      %1285 = vmatprep.subr.bf16.mxu0 0
      %1286 = vmatpush1.bf16.msra.mxu0 0
      %1287 = vmatprep.subr.bf16.mxu0 0
      %1288 = vmatpush1.bf16.msra.mxu0 0
      %1289 = vmatprep.subr.bf16.mxu0 0
      %1290 = vmatpush1.bf16.msra.mxu0 0
      %1291 = vmatprep.subr.bf16.mxu0 0
      %1292 = vmatpush1.bf16.msra.mxu0 0
      %1293 = vmatprep.subr.bf16.mxu0 0
      %1294 = vmatpush1.bf16.msra.mxu0 0
      %1295 = vmatprep.subr.bf16.mxu0 0
      %1296 = vmatpush1.bf16.msra.mxu0 0
      %1297 = vmatprep.subr.bf16.mxu0 0
      %1298 = vmatpush1.bf16.msra.mxu0 0
      %1299 = vmatprep.subr.bf16.mxu0 0
      %1300 = vmatpush1.bf16.msra.mxu0 0
      %1301 = vmatprep.mubr.bf16.mxu0 0
      %1302 = vmatmul.mubr.bf16.gmra.mrb[0].mxu0 %v1259
      %v1303 = vpop.f32.mrb[0].mxu0
      %v1304 = vadd.f32 0.0, %v1303
      %v1305 = vpop.f32.mrb[0].mxu0
      %v1306 = vadd.f32 0.0, %v1305
      %v1307 = vpop.f32.mrb[0].mxu0
      %v1308 = vpop.f32.mrb[0].mxu0
      %1309 = vdwg.mxu0
      %1310 = vmatprep.subr.bf16.mxu0 %v639
      %1311 = vmatpush1.bf16.msra.mxu0 %v638
      %1312 = vmatprep.subr.bf16.mxu0 %v643
      %1313 = vmatpush1.bf16.msra.mxu0 %v642
      %1314 = vmatprep.subr.bf16.mxu0 %v647
      %1315 = vmatpush1.bf16.msra.mxu0 %v646
      %1316 = vmatprep.subr.bf16.mxu0 %v651
      %1317 = vmatpush1.bf16.msra.mxu0 %v650
      %1318 = vmatprep.subr.bf16.mxu0 %v655
      %1319 = vmatpush1.bf16.msra.mxu0 %v654
      %1320 = vmatprep.subr.bf16.mxu0 %v659
      %1321 = vmatpush1.bf16.msra.mxu0 %v658
      %1322 = vmatprep.subr.bf16.mxu0 %v663
      %1323 = vmatpush1.bf16.msra.mxu0 %v662
      %1324 = vmatprep.subr.bf16.mxu0 %v667
      %1325 = vmatpush1.bf16.msra.mxu0 %v666
      %1326 = vmatprep.subr.bf16.mxu0 0
      %1327 = vmatpush1.bf16.msra.mxu0 0
      %1328 = vmatprep.subr.bf16.mxu0 0
      %1329 = vmatpush1.bf16.msra.mxu0 0
      %1330 = vmatprep.subr.bf16.mxu0 0
      %1331 = vmatpush1.bf16.msra.mxu0 0
      %1332 = vmatprep.subr.bf16.mxu0 0
      %1333 = vmatpush1.bf16.msra.mxu0 0
      %1334 = vmatprep.subr.bf16.mxu0 0
      %1335 = vmatpush1.bf16.msra.mxu0 0
      %1336 = vmatprep.subr.bf16.mxu0 0
      %1337 = vmatpush1.bf16.msra.mxu0 0
      %1338 = vmatprep.subr.bf16.mxu0 0
      %1339 = vmatpush1.bf16.msra.mxu0 0
      %1340 = vmatprep.subr.bf16.mxu0 0
      %1341 = vmatpush1.bf16.msra.mxu0 0
      %1342 = vmatprep.mubr.bf16.mxu0 0
      %1343 = vmatmul.mubr.bf16.gmra.mrb[0].mxu0 %v1259
      %v1344 = vpop.f32.mrb[0].mxu0
      %v1345 = vadd.f32 0.0, %v1344
      %v1346 = vpop.f32.mrb[0].mxu0
      %v1347 = vadd.f32 0.0, %v1346
      %v1348 = vpop.f32.mrb[0].mxu0
      %v1349 = vpop.f32.mrb[0].mxu0
      %1350 = vdwg.mxu0
      %v1351 = vadd.f32 %v1265, %v1304
      %v1352 = vadd.f32 %v1266, %v1306
      %v1353 = vadd.f32 %v1267, %v1345
      %v1354 = vadd.f32 %v1268, %v1347
      %v1355 = vmul.f32 %v1351, 0.5
      %v1356 = vtanh.pop %v1355
      %v1357 = vmul.f32 %v1356, 0.5
      %v1358 = vadd.f32 %v1357, 0.5
      %v1359 = vmul.f32 %v1352, 0.5
      %v1360 = vtanh.pop %v1359
      %v1361 = vmul.f32 %v1360, 0.5
      %v1362 = vadd.f32 %v1361, 0.5
      %v1363 = vtanh.pop %v1353
      %v1364 = vmul.f32 %v1354, 0.5
      %v1365 = vtanh.pop %v1364
      %v1366 = vmul.f32 %v1365, 0.5
      %v1367 = vadd.f32 %v1366, 0.5
      %v1368 = vmul.f32 %v1362, %v1256
      %v1369 = vmul.f32 %v1358, %v1363
      %v1370 = vadd.f32 %v1368, %v1369
      %v1371 = vtanh.pop %v1370
      %v1372 = vmul.f32 %v1367, %v1371
      %v1373 = vpack.c.bf16 %v1372, %v1372
      %s1374 = scalar_lea.vmem %s199, 20
      %1375 = vst [vmem:[%s1374] sm:$0xf] %v1373
      %s1376 = smul.u32 6, 4
      %s1377 = smul.addr %s1376, 8
      %s1378 = scalar_lea.vmem [#allocation2], %s1377
      %v1379 = vld [vmem:[%s1378] sm:$0xff]
      %v1380 = vld [vmem:[%s1378 + $0x8] sm:$0xff]
      %v1381 = vld [vmem:[%s1378 + $0x10] sm:$0xff]
      %v1382 = vld [vmem:[%s1378 + $0x18] sm:$0xff]
      %1383 = vmatprep.subr.bf16.mxu0 %v637
      %1384 = vmatpush1.bf16.msra.mxu0 %v636
      %1385 = vmatprep.subr.bf16.mxu0 %v641
      %1386 = vmatpush1.bf16.msra.mxu0 %v640
      %1387 = vmatprep.subr.bf16.mxu0 %v645
      %1388 = vmatpush1.bf16.msra.mxu0 %v644
      %1389 = vmatprep.subr.bf16.mxu0 %v649
      %1390 = vmatpush1.bf16.msra.mxu0 %v648
      %1391 = vmatprep.subr.bf16.mxu0 %v653
      %1392 = vmatpush1.bf16.msra.mxu0 %v652
      %1393 = vmatprep.subr.bf16.mxu0 %v657
      %1394 = vmatpush1.bf16.msra.mxu0 %v656
      %1395 = vmatprep.subr.bf16.mxu0 %v661
      %1396 = vmatpush1.bf16.msra.mxu0 %v660
      %1397 = vmatprep.subr.bf16.mxu0 %v665
      %1398 = vmatpush1.bf16.msra.mxu0 %v664
      %1399 = vmatprep.subr.bf16.mxu0 0
      %1400 = vmatpush1.bf16.msra.mxu0 0
      %1401 = vmatprep.subr.bf16.mxu0 0
      %1402 = vmatpush1.bf16.msra.mxu0 0
      %1403 = vmatprep.subr.bf16.mxu0 0
      %1404 = vmatpush1.bf16.msra.mxu0 0
      %1405 = vmatprep.subr.bf16.mxu0 0
      %1406 = vmatpush1.bf16.msra.mxu0 0
      %1407 = vmatprep.subr.bf16.mxu0 0
      %1408 = vmatpush1.bf16.msra.mxu0 0
      %1409 = vmatprep.subr.bf16.mxu0 0
      %1410 = vmatpush1.bf16.msra.mxu0 0
      %1411 = vmatprep.subr.bf16.mxu0 0
      %1412 = vmatpush1.bf16.msra.mxu0 0
      %1413 = vmatprep.subr.bf16.mxu0 0
      %1414 = vmatpush1.bf16.msra.mxu0 0
      %1415 = vmatprep.mubr.bf16.mxu0 0
      %1416 = vmatmul.mubr.bf16.gmra.mrb[0].mxu0 %v1373
      %v1417 = vpop.f32.mrb[0].mxu0
      %v1418 = vadd.f32 0.0, %v1417
      %v1419 = vpop.f32.mrb[0].mxu0
      %v1420 = vadd.f32 0.0, %v1419
      %v1421 = vpop.f32.mrb[0].mxu0
      %v1422 = vpop.f32.mrb[0].mxu0
      %1423 = vdwg.mxu0
      %1424 = vmatprep.subr.bf16.mxu0 %v639
      %1425 = vmatpush1.bf16.msra.mxu0 %v638
      %1426 = vmatprep.subr.bf16.mxu0 %v643
      %1427 = vmatpush1.bf16.msra.mxu0 %v642
      %1428 = vmatprep.subr.bf16.mxu0 %v647
      %1429 = vmatpush1.bf16.msra.mxu0 %v646
      %1430 = vmatprep.subr.bf16.mxu0 %v651
      %1431 = vmatpush1.bf16.msra.mxu0 %v650
      %1432 = vmatprep.subr.bf16.mxu0 %v655
      %1433 = vmatpush1.bf16.msra.mxu0 %v654
      %1434 = vmatprep.subr.bf16.mxu0 %v659
      %1435 = vmatpush1.bf16.msra.mxu0 %v658
      %1436 = vmatprep.subr.bf16.mxu0 %v663
      %1437 = vmatpush1.bf16.msra.mxu0 %v662
      %1438 = vmatprep.subr.bf16.mxu0 %v667
      %1439 = vmatpush1.bf16.msra.mxu0 %v666
      %1440 = vmatprep.subr.bf16.mxu0 0
      %1441 = vmatpush1.bf16.msra.mxu0 0
      %1442 = vmatprep.subr.bf16.mxu0 0
      %1443 = vmatpush1.bf16.msra.mxu0 0
      %1444 = vmatprep.subr.bf16.mxu0 0
      %1445 = vmatpush1.bf16.msra.mxu0 0
      %1446 = vmatprep.subr.bf16.mxu0 0
      %1447 = vmatpush1.bf16.msra.mxu0 0
      %1448 = vmatprep.subr.bf16.mxu0 0
      %1449 = vmatpush1.bf16.msra.mxu0 0
      %1450 = vmatprep.subr.bf16.mxu0 0
      %1451 = vmatpush1.bf16.msra.mxu0 0
      %1452 = vmatprep.subr.bf16.mxu0 0
      %1453 = vmatpush1.bf16.msra.mxu0 0
      %1454 = vmatprep.subr.bf16.mxu0 0
      %1455 = vmatpush1.bf16.msra.mxu0 0
      %1456 = vmatprep.mubr.bf16.mxu0 0
      %1457 = vmatmul.mubr.bf16.gmra.mrb[0].mxu0 %v1373
      %v1458 = vpop.f32.mrb[0].mxu0
      %v1459 = vadd.f32 0.0, %v1458
      %v1460 = vpop.f32.mrb[0].mxu0
      %v1461 = vadd.f32 0.0, %v1460
      %v1462 = vpop.f32.mrb[0].mxu0
      %v1463 = vpop.f32.mrb[0].mxu0
      %1464 = vdwg.mxu0
      %v1465 = vadd.f32 %v1379, %v1418
      %v1466 = vadd.f32 %v1380, %v1420
      %v1467 = vadd.f32 %v1381, %v1459
      %v1468 = vadd.f32 %v1382, %v1461
      %v1469 = vmul.f32 %v1465, 0.5
      %v1470 = vtanh.pop %v1469
      %v1471 = vmul.f32 %v1470, 0.5
      %v1472 = vadd.f32 %v1471, 0.5
      %v1473 = vmul.f32 %v1466, 0.5
      %v1474 = vtanh.pop %v1473
      %v1475 = vmul.f32 %v1474, 0.5
      %v1476 = vadd.f32 %v1475, 0.5
      %v1477 = vtanh.pop %v1467
      %v1478 = vmul.f32 %v1468, 0.5
      %v1479 = vtanh.pop %v1478
      %v1480 = vmul.f32 %v1479, 0.5
      %v1481 = vadd.f32 %v1480, 0.5
      %v1482 = vmul.f32 %v1476, %v1370
      %v1483 = vmul.f32 %v1472, %v1477
      %v1484 = vadd.f32 %v1482, %v1483
      %v1485 = vtanh.pop %v1484
      %v1486 = vmul.f32 %v1481, %v1485
      %v1487 = vpack.c.bf16 %v1486, %v1486
      %s1488 = scalar_lea.vmem %s199, 24
      %1489 = vst [vmem:[%s1488] sm:$0xf] %v1487
      %s1490 = smul.u32 7, 4
      %s1491 = smul.addr %s1490, 8
      %s1492 = scalar_lea.vmem [#allocation2], %s1491
      %v1493 = vld [vmem:[%s1492] sm:$0xff]
      %v1494 = vld [vmem:[%s1492 + $0x8] sm:$0xff]
      %v1495 = vld [vmem:[%s1492 + $0x10] sm:$0xff]
      %v1496 = vld [vmem:[%s1492 + $0x18] sm:$0xff]
      %1497 = vmatprep.subr.bf16.mxu0 %v637
      %1498 = vmatpush1.bf16.msra.mxu0 %v636
      %1499 = vmatprep.subr.bf16.mxu0 %v641
      %1500 = vmatpush1.bf16.msra.mxu0 %v640
      %1501 = vmatprep.subr.bf16.mxu0 %v645
      %1502 = vmatpush1.bf16.msra.mxu0 %v644
      %1503 = vmatprep.subr.bf16.mxu0 %v649
      %1504 = vmatpush1.bf16.msra.mxu0 %v648
      %1505 = vmatprep.subr.bf16.mxu0 %v653
      %1506 = vmatpush1.bf16.msra.mxu0 %v652
      %1507 = vmatprep.subr.bf16.mxu0 %v657
      %1508 = vmatpush1.bf16.msra.mxu0 %v656
      %1509 = vmatprep.subr.bf16.mxu0 %v661
      %1510 = vmatpush1.bf16.msra.mxu0 %v660
      %1511 = vmatprep.subr.bf16.mxu0 %v665
      %1512 = vmatpush1.bf16.msra.mxu0 %v664
      %1513 = vmatprep.subr.bf16.mxu0 0
      %1514 = vmatpush1.bf16.msra.mxu0 0
      %1515 = vmatprep.subr.bf16.mxu0 0
      %1516 = vmatpush1.bf16.msra.mxu0 0
      %1517 = vmatprep.subr.bf16.mxu0 0
      %1518 = vmatpush1.bf16.msra.mxu0 0
      %1519 = vmatprep.subr.bf16.mxu0 0
      %1520 = vmatpush1.bf16.msra.mxu0 0
      %1521 = vmatprep.subr.bf16.mxu0 0
      %1522 = vmatpush1.bf16.msra.mxu0 0
      %1523 = vmatprep.subr.bf16.mxu0 0
      %1524 = vmatpush1.bf16.msra.mxu0 0
      %1525 = vmatprep.subr.bf16.mxu0 0
      %1526 = vmatpush1.bf16.msra.mxu0 0
      %1527 = vmatprep.subr.bf16.mxu0 0
      %1528 = vmatpush1.bf16.msra.mxu0 0
      %1529 = vmatprep.mubr.bf16.mxu0 0
      %1530 = vmatmul.mubr.bf16.gmra.mrb[0].mxu0 %v1487
      %v1531 = vpop.f32.mrb[0].mxu0
      %v1532 = vadd.f32 0.0, %v1531
      %v1533 = vpop.f32.mrb[0].mxu0
      %v1534 = vadd.f32 0.0, %v1533
      %v1535 = vpop.f32.mrb[0].mxu0
      %v1536 = vpop.f32.mrb[0].mxu0
      %1537 = vdwg.mxu0
      %1538 = vmatprep.subr.bf16.mxu0 %v639
      %1539 = vmatpush1.bf16.msra.mxu0 %v638
      %1540 = vmatprep.subr.bf16.mxu0 %v643
      %1541 = vmatpush1.bf16.msra.mxu0 %v642
      %1542 = vmatprep.subr.bf16.mxu0 %v647
      %1543 = vmatpush1.bf16.msra.mxu0 %v646
      %1544 = vmatprep.subr.bf16.mxu0 %v651
      %1545 = vmatpush1.bf16.msra.mxu0 %v650
      %1546 = vmatprep.subr.bf16.mxu0 %v655
      %1547 = vmatpush1.bf16.msra.mxu0 %v654
      %1548 = vmatprep.subr.bf16.mxu0 %v659
      %1549 = vmatpush1.bf16.msra.mxu0 %v658
      %1550 = vmatprep.subr.bf16.mxu0 %v663
      %1551 = vmatpush1.bf16.msra.mxu0 %v662
      %1552 = vmatprep.subr.bf16.mxu0 %v667
      %1553 = vmatpush1.bf16.msra.mxu0 %v666
      %1554 = vmatprep.subr.bf16.mxu0 0
      %1555 = vmatpush1.bf16.msra.mxu0 0
      %1556 = vmatprep.subr.bf16.mxu0 0
      %1557 = vmatpush1.bf16.msra.mxu0 0
      %1558 = vmatprep.subr.bf16.mxu0 0
      %1559 = vmatpush1.bf16.msra.mxu0 0
      %1560 = vmatprep.subr.bf16.mxu0 0
      %1561 = vmatpush1.bf16.msra.mxu0 0
      %1562 = vmatprep.subr.bf16.mxu0 0
      %1563 = vmatpush1.bf16.msra.mxu0 0
      %1564 = vmatprep.subr.bf16.mxu0 0
      %1565 = vmatpush1.bf16.msra.mxu0 0
      %1566 = vmatprep.subr.bf16.mxu0 0
      %1567 = vmatpush1.bf16.msra.mxu0 0
      %1568 = vmatprep.subr.bf16.mxu0 0
      %1569 = vmatpush1.bf16.msra.mxu0 0
      %1570 = vmatprep.mubr.bf16.mxu0 0
      %1571 = vmatmul.mubr.bf16.gmra.mrb[0].mxu0 %v1487
      %v1572 = vpop.f32.mrb[0].mxu0
      %v1573 = vadd.f32 0.0, %v1572
      %v1574 = vpop.f32.mrb[0].mxu0
      %v1575 = vadd.f32 0.0, %v1574
      %v1576 = vpop.f32.mrb[0].mxu0
      %v1577 = vpop.f32.mrb[0].mxu0
      %1578 = vdwg.mxu0
      %v1579 = vadd.f32 %v1493, %v1532
      %v1580 = vadd.f32 %v1494, %v1534
      %v1581 = vadd.f32 %v1495, %v1573
      %v1582 = vadd.f32 %v1496, %v1575
      %v1583 = vmul.f32 %v1579, 0.5
      %v1584 = vtanh.pop %v1583
      %v1585 = vmul.f32 %v1584, 0.5
      %v1586 = vadd.f32 %v1585, 0.5
      %v1587 = vmul.f32 %v1580, 0.5
      %v1588 = vtanh.pop %v1587
      %v1589 = vmul.f32 %v1588, 0.5
      %v1590 = vadd.f32 %v1589, 0.5
      %v1591 = vtanh.pop %v1581
      %v1592 = vmul.f32 %v1582, 0.5
      %v1593 = vtanh.pop %v1592
      %v1594 = vmul.f32 %v1593, 0.5
      %v1595 = vadd.f32 %v1594, 0.5
      %v1596 = vmul.f32 %v1590, %v1484
      %v1597 = vmul.f32 %v1586, %v1591
      %v1598 = vadd.f32 %v1596, %v1597
      %v1599 = vtanh.pop %v1598
      %v1600 = vmul.f32 %v1595, %v1599
      %v1601 = vpack.c.bf16 %v1600, %v1600
      %s1602 = scalar_lea.vmem %s199, 28
      %1603 = vst [vmem:[%s1602] sm:$0xf] %v1601
      %1604 = vst [vmem:[#allocation3] sm:$0xff] %v1600
      %1605 = vst [vmem:[%s530] sm:$0xff] %v1598
      %s1606 = smul.u32 8, %s15
      %p1607 = scmp.lt.s32.totalorder %s1606, 15
      %s1608 = scalar_select %p1607, %s1606, 15
      %s1609 = smul.addr %s1608, 4
      %s1610 = scalar_lea.vmem %s4, %s1609
      // Predicated region
      $region41: #{_lambda_.2} parent=35 // pred_check
        %p1611 = pneg %p122
      $region42: #{_lambda_.2} parent=35 // pred_check_branch
        %1613 = sbr.rel (%p1611) target = $region44
      $region43: #{_lambda_.2} parent=35 // pred_region
        %s1614 = smul.u32 8, %s15
      $region44: #{_lambda_.2} parent=35 // pred_fallthru
        _
    $region36: #{_lambda_.2} parent=5 // pred_fallthru
      _
    %p1615 = scmp.le.s32.totalorder 2, %s10
    // Predicated region
    $region45: #{_lambda_.2} parent=5 // pred_check
      %p1616 = pneg %p1615
    $region46: #{_lambda_.2} parent=5 // pred_check_branch
      %1618 = sbr.rel (%p1616) target = $region48
    $region47: #{_lambda_.2} parent=5 // pred_region
      %s1619 = ssub.s32 %s10, 2
      // Predicated region
      $region49: #{_lambda_.2} parent=47 // pred_check
        %p1620 = pneg %p128
      $region50: #{_lambda_.2} parent=47 // pred_check_branch
        %1622 = sbr.rel (%p1620) target = $region52
      $region51: #{_lambda_.2} parent=47 // pred_region
        %s1623 = smul.u32 8, %s16
        %p1624 = scmp.lt.s32.totalorder %s1623, 15
        %s1625 = scalar_select %p1624, %s1623, 15
        %s1626 = smul.addr %s1625, 4
        %s1627 = scalar_lea.vmem %s4, %s1626
      $region52: #{_lambda_.2} parent=47 // pred_fallthru
        _
    $region48: #{_lambda_.2} parent=5 // pred_fallthru
      _
  $region6: #{_lambda_.2} parent=0 // loop_footer
    %s14 = sadd.s32 1, %s10
  $region7: #{_lambda_.2} parent=0 // loop_footer_branch
    %9 = sbr.rel target = $region3
  $region8: #{_lambda_.2} parent=0 // loop_exit
    _

</llo_original>
